<compile_context>
chip_gen: v6e
topology: v6e:2x2x1
jax: 0.10.0
libtpu: 0.0.40
codegen_flags: <defaults>
</compile_context>

<pallas_src>
import jax
import jax.numpy as jnp
from jax.experimental import pallas as pl
from jax.experimental.pallas import tpu as pltpu

DROPOUT_P = 0.3


def charrnn_kernel(x_ref, h0_ref, u_ref,
                   wir_ref, wiz_ref, win_ref,
                   whr_ref, whz_ref, whn_ref,
                   br_ref, bz_ref, bin_ref, bhn_ref,
                   wl_ref, bl_ref,
                   probs_ref, hidden_ref,
                   hs_scr):
    """Single-layer GRU (batch=1) + Linear + dropout + softmax.

    x_ref            : (S, V)  f32   input rows (batch squeezed)
    h0_ref           : (1, H)  f32   initial hidden state
    u_ref            : (S, O)  f32   dropout uniforms in [0, 1)
    wir/wiz/win_ref  : (V, H)  f32   GRU input weights per gate (pre-transposed)
    whr/whz/whn_ref  : (H, H)  f32   GRU hidden weights per gate (pre-transposed)
    br/bz_ref        : (1, H)  f32   combined biases b_i* + b_h* for r, z gates
    bin/bhn_ref      : (1, H)  f32   n-gate biases (kept separate per GRU formula)
    wl_ref           : (H, O)  f32   Linear weight (transposed), bl_ref (1, O)
    probs_ref        : (S, O)  f32   softmax(dropout(linear(gru_out)))
    hidden_ref       : (1, H)  f32   final hidden state
    hs_scr           : (S, H)  f32   VMEM scratch holding all h_t rows
    """
    S = x_ref.shape[0]
    x = x_ref[...]

    # ---- Hoisted input projection: one well-shaped matmul per gate, off the
    # serial critical path.  Biases folded in here.
    a_r = jnp.dot(x, wir_ref[...], preferred_element_type=jnp.float32) + br_ref[...]   # (S, H)
    a_z = jnp.dot(x, wiz_ref[...], preferred_element_type=jnp.float32) + bz_ref[...]   # (S, H)
    a_n = jnp.dot(x, win_ref[...], preferred_element_type=jnp.float32) + bin_ref[...]  # (S, H)

    whr = whr_ref[...]
    whz = whz_ref[...]
    whn = whn_ref[...]
    b_hn = bhn_ref[...]

    # ---- Irreducible recurrence, fully unrolled (S is small & static).
    # TODO(synk): on v5e/v6e, W_hh could be pinned in the MXU staging registers via
    # pltpu.matmul_push_rhs/acc_lhs/pop to skip the per-step RHS push.
    h = h0_ref[...]                                                    # (1, H)
    for t in range(S):
        hr = jnp.dot(h, whr, preferred_element_type=jnp.float32)
        hz = jnp.dot(h, whz, preferred_element_type=jnp.float32)
        hn = jnp.dot(h, whn, preferred_element_type=jnp.float32) + b_hn
        r = jax.nn.sigmoid(a_r[t:t + 1, :] + hr)
        z = jax.nn.sigmoid(a_z[t:t + 1, :] + hz)
        n = jnp.tanh(a_n[t:t + 1, :] + r * hn)
        h = (1.0 - z) * n + z * h                                      # PyTorch GRU update
        hs_scr[pl.ds(t, 1), :] = h

    hidden_ref[...] = h

    # ---- Deferred output Linear: one (S,H)@(H,O) MXU call for the whole sequence.
    hs = hs_scr[...]                                                   # (S, H)
    logits = jnp.dot(hs, wl_ref[...], preferred_element_type=jnp.float32) + bl_ref[...]  # (S, O)

    # ---- Dropout (F.dropout training semantics: keep w.p. 1-p, scale 1/(1-p)).
    # RNG stream differs from torch; uniforms supplied from the wrapper.
    keep = u_ref[...] >= DROPOUT_P
    dropped = jnp.where(keep, logits * (1.0 / (1.0 - DROPOUT_P)), 0.0)

    # ---- Softmax over the last dim (== PyTorch dim=2 of the (1, S, O) tensor).
    m = jnp.max(dropped, axis=-1, keepdims=True)
    e = jnp.exp(dropped - m)
    probs_ref[...] = e * (1.0 / jnp.sum(e, axis=-1, keepdims=True))


@jax.jit
def charrnn_forward(pw, h0, dropout_u,
                    w_ih_r, w_ih_z, w_ih_n,
                    w_hh_r, w_hh_z, w_hh_n,
                    b_r, b_z, b_in, b_hn,
                    w_lin_t, b_lin):
    """pw: (1, S, V) f32.  Returns (output.view(1,-1), hidden (1,1,H))."""
    _, S, V = pw.shape
    H = h0.shape[-1]
    O = w_lin_t.shape[1]

    vmem = pl.BlockSpec(memory_space=pltpu.MemorySpace.VMEM)

    probs, hidden = pl.pallas_call(
        charrnn_kernel,
        out_shape=(jax.ShapeDtypeStruct((S, O), jnp.float32),
                   jax.ShapeDtypeStruct((1, H), jnp.float32)),
        in_specs=[vmem] * 15,
        out_specs=(vmem, vmem),
        scratch_shapes=[pltpu.VMEM((S, H), jnp.float32)],
    )(pw.reshape(S, V), h0, dropout_u,
      w_ih_r, w_ih_z, w_ih_n,
      w_hh_r, w_hh_z, w_hh_n,
      b_r, b_z, b_in, b_hn,
      w_lin_t, b_lin)

    # output.view(1, -1); hidden as (1, 1, H).  (Flatten is free metadata here.)
    return probs.reshape(1, S * O), hidden.reshape(1, 1, H)


def init_params(key, vocab_size, hidden_size, output_size):
    """PyTorch-style uniform(-1/sqrt(H), 1/sqrt(H)), then re-laid-out per gate."""
    ks = jax.random.split(key, 6)
    H = hidden_size
    bound = 1.0 / jnp.sqrt(hidden_size)
    u = lambda k, shape: jax.random.uniform(k, shape, jnp.float32, -bound, bound)
    # PyTorch GRU layout: weight_ih (3H, V), weight_hh (3H, H), biases (3H,), gates [r, z, n].
    w_ih = u(ks[0], (3 * H, vocab_size))
    w_hh = u(ks[1], (3 * H, hidden_size))
    b_ih = u(ks[2], (3 * H,))
    b_hh = u(ks[3], (3 * H,))
    # Linear: weight (O, H), bias (O,)
    w_lin = u(ks[4], (output_size, hidden_size))
    b_lin = u(ks[5], (output_size,))

    return dict(
        w_ih_r=w_ih[0:H, :].T,                 # (V, H)
        w_ih_z=w_ih[H:2 * H, :].T,
        w_ih_n=w_ih[2 * H:, :].T,
        w_hh_r=w_hh[0:H, :].T,                 # (H, H)
        w_hh_z=w_hh[H:2 * H, :].T,
        w_hh_n=w_hh[2 * H:, :].T,
        b_r=(b_ih[0:H] + b_hh[0:H]).reshape(1, H),       # b_ir + b_hr
        b_z=(b_ih[H:2 * H] + b_hh[H:2 * H]).reshape(1, H),
        b_in=b_ih[2 * H:].reshape(1, H),
        b_hn=b_hh[2 * H:].reshape(1, H),
        w_lin_t=w_lin.T,                       # (H, O)
        b_lin=b_lin.reshape(1, output_size),
    )


if __name__ == "__main__":
    vocab_size, hidden_size, output_size = 16, 32, 16
    seq_len, batch = 8, 1                      # module's hidden=None path assumes batch=1

    key = jax.random.PRNGKey(0)
    k_x, k_p, k_d = jax.random.split(key, 3)
    params = init_params(k_p, vocab_size, hidden_size, output_size)

    pw = jax.random.normal(k_x, (batch, seq_len, vocab_size), jnp.float32)
    h0 = jnp.zeros((1, hidden_size), jnp.float32)          # torch.zeros(1, 1, H)
    dropout_u = jax.random.uniform(k_d, (seq_len, output_size), jnp.float32)

    out, hidden = charrnn_forward(pw, h0, dropout_u, **params)
    jax.block_until_ready((out, hidden))

    assert out.shape == (1, seq_len * output_size)
    assert hidden.shape == (1, 1, hidden_size)
    row_sums = out.reshape(seq_len, output_size).sum(axis=-1)
    assert jnp.allclose(row_sums, 1.0, atol=1e-5)           # softmax rows sum to 1
    print("KERNEL_OK")
</pallas_src>

<mosaic_0001>
module attributes {stable_mosaic.version = 11 : i64} {
  func.func @charrnn_kernel(%arg0: memref<8x16xf32, #tpu.memory_space<vmem>>, %arg1: memref<1x32xf32, #tpu.memory_space<vmem>>, %arg2: memref<8x16xf32, #tpu.memory_space<vmem>>, %arg3: memref<16x32xf32, #tpu.memory_space<vmem>>, %arg4: memref<16x32xf32, #tpu.memory_space<vmem>>, %arg5: memref<16x32xf32, #tpu.memory_space<vmem>>, %arg6: memref<32x32xf32, #tpu.memory_space<vmem>>, %arg7: memref<32x32xf32, #tpu.memory_space<vmem>>, %arg8: memref<32x32xf32, #tpu.memory_space<vmem>>, %arg9: memref<1x32xf32, #tpu.memory_space<vmem>>, %arg10: memref<1x32xf32, #tpu.memory_space<vmem>>, %arg11: memref<1x32xf32, #tpu.memory_space<vmem>>, %arg12: memref<1x32xf32, #tpu.memory_space<vmem>>, %arg13: memref<32x16xf32, #tpu.memory_space<vmem>>, %arg14: memref<1x16xf32, #tpu.memory_space<vmem>>, %arg15: memref<8x16xf32, #tpu.memory_space<vmem>>, %arg16: memref<1x32xf32, #tpu.memory_space<vmem>>, %arg17: memref<8x32xf32, #tpu.memory_space<vmem>>) attributes {dimension_semantics = [], scalar_prefetch = 0 : i64, scratch_operands = 1 : i64, tpu.core_type = #tpu.core_type<tc>} {
    %c0 = arith.constant 0 : index
    %c0_0 = arith.constant 0 : index
    %0 = vector.load %arg0[%c0, %c0_0] : memref<8x16xf32, #tpu.memory_space<vmem>>, vector<8x16xf32>
    %c0_1 = arith.constant 0 : index
    %c0_2 = arith.constant 0 : index
    %1 = vector.load %arg3[%c0_1, %c0_2] : memref<16x32xf32, #tpu.memory_space<vmem>>, vector<16x32xf32>
    %cst = arith.constant dense<0.000000e+00> : vector<8x32xf32>
    %2 = tpu.matmul %0, %1, %cst {dimension_numbers = #tpu.dot_dimension_numbers<[1], [0], [0], [1], [0, 0, 1, 1], [], []>} : vector<8x16xf32>, vector<16x32xf32>, vector<8x32xf32> -> vector<8x32xf32>
    %c0_3 = arith.constant 0 : index
    %c0_4 = arith.constant 0 : index
    %3 = vector.load %arg9[%c0_3, %c0_4] : memref<1x32xf32, #tpu.memory_space<vmem>>, vector<1x32xf32>
    %4 = vector.broadcast %3 : vector<1x32xf32> to vector<8x32xf32>
    %5 = arith.addf %2, %4 : vector<8x32xf32>
    %c0_5 = arith.constant 0 : index
    %c0_6 = arith.constant 0 : index
    %6 = vector.load %arg4[%c0_5, %c0_6] : memref<16x32xf32, #tpu.memory_space<vmem>>, vector<16x32xf32>
    %cst_7 = arith.constant dense<0.000000e+00> : vector<8x32xf32>
    %7 = tpu.matmul %0, %6, %cst_7 {dimension_numbers = #tpu.dot_dimension_numbers<[1], [0], [0], [1], [0, 0, 1, 1], [], []>} : vector<8x16xf32>, vector<16x32xf32>, vector<8x32xf32> -> vector<8x32xf32>
    %c0_8 = arith.constant 0 : index
    %c0_9 = arith.constant 0 : index
    %8 = vector.load %arg10[%c0_8, %c0_9] : memref<1x32xf32, #tpu.memory_space<vmem>>, vector<1x32xf32>
    %9 = vector.broadcast %8 : vector<1x32xf32> to vector<8x32xf32>
    %10 = arith.addf %7, %9 : vector<8x32xf32>
    %c0_10 = arith.constant 0 : index
    %c0_11 = arith.constant 0 : index
    %11 = vector.load %arg5[%c0_10, %c0_11] : memref<16x32xf32, #tpu.memory_space<vmem>>, vector<16x32xf32>
    %cst_12 = arith.constant dense<0.000000e+00> : vector<8x32xf32>
    %12 = tpu.matmul %0, %11, %cst_12 {dimension_numbers = #tpu.dot_dimension_numbers<[1], [0], [0], [1], [0, 0, 1, 1], [], []>} : vector<8x16xf32>, vector<16x32xf32>, vector<8x32xf32> -> vector<8x32xf32>
    %c0_13 = arith.constant 0 : index
    %c0_14 = arith.constant 0 : index
    %13 = vector.load %arg11[%c0_13, %c0_14] : memref<1x32xf32, #tpu.memory_space<vmem>>, vector<1x32xf32>
    %14 = vector.broadcast %13 : vector<1x32xf32> to vector<8x32xf32>
    %15 = arith.addf %12, %14 : vector<8x32xf32>
    %c0_15 = arith.constant 0 : index
    %c0_16 = arith.constant 0 : index
    %16 = vector.load %arg6[%c0_15, %c0_16] : memref<32x32xf32, #tpu.memory_space<vmem>>, vector<32x32xf32>
    %c0_17 = arith.constant 0 : index
    %c0_18 = arith.constant 0 : index
    %17 = vector.load %arg7[%c0_17, %c0_18] : memref<32x32xf32, #tpu.memory_space<vmem>>, vector<32x32xf32>
    %c0_19 = arith.constant 0 : index
    %c0_20 = arith.constant 0 : index
    %18 = vector.load %arg8[%c0_19, %c0_20] : memref<32x32xf32, #tpu.memory_space<vmem>>, vector<32x32xf32>
    %c0_21 = arith.constant 0 : index
    %c0_22 = arith.constant 0 : index
    %19 = vector.load %arg12[%c0_21, %c0_22] : memref<1x32xf32, #tpu.memory_space<vmem>>, vector<1x32xf32>
    %c0_23 = arith.constant 0 : index
    %c0_24 = arith.constant 0 : index
    %20 = vector.load %arg1[%c0_23, %c0_24] : memref<1x32xf32, #tpu.memory_space<vmem>>, vector<1x32xf32>
    %cst_25 = arith.constant dense<0.000000e+00> : vector<1x32xf32>
    %21 = tpu.matmul %20, %16, %cst_25 {dimension_numbers = #tpu.dot_dimension_numbers<[1], [0], [0], [1], [0, 0, 1, 1], [], []>} : vector<1x32xf32>, vector<32x32xf32>, vector<1x32xf32> -> vector<1x32xf32>
    %cst_26 = arith.constant dense<0.000000e+00> : vector<1x32xf32>
    %22 = tpu.matmul %20, %17, %cst_26 {dimension_numbers = #tpu.dot_dimension_numbers<[1], [0], [0], [1], [0, 0, 1, 1], [], []>} : vector<1x32xf32>, vector<32x32xf32>, vector<1x32xf32> -> vector<1x32xf32>
    %cst_27 = arith.constant dense<0.000000e+00> : vector<1x32xf32>
    %23 = tpu.matmul %20, %18, %cst_27 {dimension_numbers = #tpu.dot_dimension_numbers<[1], [0], [0], [1], [0, 0, 1, 1], [], []>} : vector<1x32xf32>, vector<32x32xf32>, vector<1x32xf32> -> vector<1x32xf32>
    %24 = arith.addf %23, %19 : vector<1x32xf32>
    %25 = vector.extract_strided_slice %5 {offsets = [0, 0], sizes = [1, 32], strides = [1, 1]} : vector<8x32xf32> to vector<1x32xf32>
    %26 = arith.addf %25, %21 : vector<1x32xf32>
    %27 = arith.negf %26 : vector<1x32xf32>
    %28 = math.exp %27 : vector<1x32xf32>
    %cst_28 = arith.constant 1.000000e+00 : f32
    %29 = vector.broadcast %cst_28 : f32 to vector<1x32xf32>
    %30 = arith.addf %29, %28 : vector<1x32xf32>
    %31 = arith.divf %29, %30 : vector<1x32xf32>
    %32 = vector.extract_strided_slice %10 {offsets = [0, 0], sizes = [1, 32], strides = [1, 1]} : vector<8x32xf32> to vector<1x32xf32>
    %33 = arith.addf %32, %22 : vector<1x32xf32>
    %34 = arith.negf %33 : vector<1x32xf32>
    %35 = math.exp %34 : vector<1x32xf32>
    %cst_29 = arith.constant 1.000000e+00 : f32
    %36 = vector.broadcast %cst_29 : f32 to vector<1x32xf32>
    %37 = arith.addf %36, %35 : vector<1x32xf32>
    %38 = arith.divf %36, %37 : vector<1x32xf32>
    %39 = vector.extract_strided_slice %15 {offsets = [0, 0], sizes = [1, 32], strides = [1, 1]} : vector<8x32xf32> to vector<1x32xf32>
    %40 = arith.mulf %31, %24 : vector<1x32xf32>
    %41 = arith.addf %39, %40 : vector<1x32xf32>
    %42 = math.tanh %41 : vector<1x32xf32>
    %cst_30 = arith.constant 1.000000e+00 : f32
    %43 = vector.broadcast %cst_30 : f32 to vector<1x32xf32>
    %44 = arith.subf %43, %38 : vector<1x32xf32>
    %45 = arith.mulf %44, %42 : vector<1x32xf32>
    %46 = arith.mulf %38, %20 : vector<1x32xf32>
    %47 = arith.addf %45, %46 : vector<1x32xf32>
    %c0_31 = arith.constant 0 : index
    %c0_32 = arith.constant 0 : index
    %48 = vector.load %arg17[%c0_31, %c0_32] : memref<8x32xf32, #tpu.memory_space<vmem>>, vector<1x32xf32>
    tpu.vector_store %arg17[%c0_31, %c0_32], %47 {strides = array<i32>} : memref<8x32xf32, #tpu.memory_space<vmem>>, vector<1x32xf32>,
    %cst_33 = arith.constant dense<0.000000e+00> : vector<1x32xf32>
    %49 = tpu.matmul %47, %16, %cst_33 {dimension_numbers = #tpu.dot_dimension_numbers<[1], [0], [0], [1], [0, 0, 1, 1], [], []>} : vector<1x32xf32>, vector<32x32xf32>, vector<1x32xf32> -> vector<1x32xf32>
    %cst_34 = arith.constant dense<0.000000e+00> : vector<1x32xf32>
    %50 = tpu.matmul %47, %17, %cst_34 {dimension_numbers = #tpu.dot_dimension_numbers<[1], [0], [0], [1], [0, 0, 1, 1], [], []>} : vector<1x32xf32>, vector<32x32xf32>, vector<1x32xf32> -> vector<1x32xf32>
    %cst_35 = arith.constant dense<0.000000e+00> : vector<1x32xf32>
    %51 = tpu.matmul %47, %18, %cst_35 {dimension_numbers = #tpu.dot_dimension_numbers<[1], [0], [0], [1], [0, 0, 1, 1], [], []>} : vector<1x32xf32>, vector<32x32xf32>, vector<1x32xf32> -> vector<1x32xf32>
    %52 = arith.addf %51, %19 : vector<1x32xf32>
    %53 = vector.extract_strided_slice %5 {offsets = [1, 0], sizes = [1, 32], strides = [1, 1]} : vector<8x32xf32> to vector<1x32xf32>
    %54 = arith.addf %53, %49 : vector<1x32xf32>
    %55 = arith.negf %54 : vector<1x32xf32>
    %56 = math.exp %55 : vector<1x32xf32>
    %cst_36 = arith.constant 1.000000e+00 : f32
    %57 = vector.broadcast %cst_36 : f32 to vector<1x32xf32>
    %58 = arith.addf %57, %56 : vector<1x32xf32>
    %59 = arith.divf %57, %58 : vector<1x32xf32>
    %60 = vector.extract_strided_slice %10 {offsets = [1, 0], sizes = [1, 32], strides = [1, 1]} : vector<8x32xf32> to vector<1x32xf32>
    %61 = arith.addf %60, %50 : vector<1x32xf32>
    %62 = arith.negf %61 : vector<1x32xf32>
    %63 = math.exp %62 : vector<1x32xf32>
    %cst_37 = arith.constant 1.000000e+00 : f32
    %64 = vector.broadcast %cst_37 : f32 to vector<1x32xf32>
    %65 = arith.addf %64, %63 : vector<1x32xf32>
    %66 = arith.divf %64, %65 : vector<1x32xf32>
    %67 = vector.extract_strided_slice %15 {offsets = [1, 0], sizes = [1, 32], strides = [1, 1]} : vector<8x32xf32> to vector<1x32xf32>
    %68 = arith.mulf %59, %52 : vector<1x32xf32>
    %69 = arith.addf %67, %68 : vector<1x32xf32>
    %70 = math.tanh %69 : vector<1x32xf32>
    %cst_38 = arith.constant 1.000000e+00 : f32
    %71 = vector.broadcast %cst_38 : f32 to vector<1x32xf32>
    %72 = arith.subf %71, %66 : vector<1x32xf32>
    %73 = arith.mulf %72, %70 : vector<1x32xf32>
    %74 = arith.mulf %66, %47 : vector<1x32xf32>
    %75 = arith.addf %73, %74 : vector<1x32xf32>
    %c1 = arith.constant 1 : index
    %c0_39 = arith.constant 0 : index
    %76 = vector.load %arg17[%c1, %c0_39] : memref<8x32xf32, #tpu.memory_space<vmem>>, vector<1x32xf32>
    tpu.vector_store %arg17[%c1, %c0_39], %75 {strides = array<i32>} : memref<8x32xf32, #tpu.memory_space<vmem>>, vector<1x32xf32>,
    %cst_40 = arith.constant dense<0.000000e+00> : vector<1x32xf32>
    %77 = tpu.matmul %75, %16, %cst_40 {dimension_numbers = #tpu.dot_dimension_numbers<[1], [0], [0], [1], [0, 0, 1, 1], [], []>} : vector<1x32xf32>, vector<32x32xf32>, vector<1x32xf32> -> vector<1x32xf32>
    %cst_41 = arith.constant dense<0.000000e+00> : vector<1x32xf32>
    %78 = tpu.matmul %75, %17, %cst_41 {dimension_numbers = #tpu.dot_dimension_numbers<[1], [0], [0], [1], [0, 0, 1, 1], [], []>} : vector<1x32xf32>, vector<32x32xf32>, vector<1x32xf32> -> vector<1x32xf32>
    %cst_42 = arith.constant dense<0.000000e+00> : vector<1x32xf32>
    %79 = tpu.matmul %75, %18, %cst_42 {dimension_numbers = #tpu.dot_dimension_numbers<[1], [0], [0], [1], [0, 0, 1, 1], [], []>} : vector<1x32xf32>, vector<32x32xf32>, vector<1x32xf32> -> vector<1x32xf32>
    %80 = arith.addf %79, %19 : vector<1x32xf32>
    %81 = vector.extract_strided_slice %5 {offsets = [2, 0], sizes = [1, 32], strides = [1, 1]} : vector<8x32xf32> to vector<1x32xf32>
    %82 = arith.addf %81, %77 : vector<1x32xf32>
    %83 = arith.negf %82 : vector<1x32xf32>
    %84 = math.exp %83 : vector<1x32xf32>
    %cst_43 = arith.constant 1.000000e+00 : f32
    %85 = vector.broadcast %cst_43 : f32 to vector<1x32xf32>
    %86 = arith.addf %85, %84 : vector<1x32xf32>
    %87 = arith.divf %85, %86 : vector<1x32xf32>
    %88 = vector.extract_strided_slice %10 {offsets = [2, 0], sizes = [1, 32], strides = [1, 1]} : vector<8x32xf32> to vector<1x32xf32>
    %89 = arith.addf %88, %78 : vector<1x32xf32>
    %90 = arith.negf %89 : vector<1x32xf32>
    %91 = math.exp %90 : vector<1x32xf32>
    %cst_44 = arith.constant 1.000000e+00 : f32
    %92 = vector.broadcast %cst_44 : f32 to vector<1x32xf32>
    %93 = arith.addf %92, %91 : vector<1x32xf32>
    %94 = arith.divf %92, %93 : vector<1x32xf32>
    %95 = vector.extract_strided_slice %15 {offsets = [2, 0], sizes = [1, 32], strides = [1, 1]} : vector<8x32xf32> to vector<1x32xf32>
    %96 = arith.mulf %87, %80 : vector<1x32xf32>
    %97 = arith.addf %95, %96 : vector<1x32xf32>
    %98 = math.tanh %97 : vector<1x32xf32>
    %cst_45 = arith.constant 1.000000e+00 : f32
    %99 = vector.broadcast %cst_45 : f32 to vector<1x32xf32>
    %100 = arith.subf %99, %94 : vector<1x32xf32>
    %101 = arith.mulf %100, %98 : vector<1x32xf32>
    %102 = arith.mulf %94, %75 : vector<1x32xf32>
    %103 = arith.addf %101, %102 : vector<1x32xf32>
    %c2 = arith.constant 2 : index
    %c0_46 = arith.constant 0 : index
    %104 = vector.load %arg17[%c2, %c0_46] : memref<8x32xf32, #tpu.memory_space<vmem>>, vector<1x32xf32>
    tpu.vector_store %arg17[%c2, %c0_46], %103 {strides = array<i32>} : memref<8x32xf32, #tpu.memory_space<vmem>>, vector<1x32xf32>,
    %cst_47 = arith.constant dense<0.000000e+00> : vector<1x32xf32>
    %105 = tpu.matmul %103, %16, %cst_47 {dimension_numbers = #tpu.dot_dimension_numbers<[1], [0], [0], [1], [0, 0, 1, 1], [], []>} : vector<1x32xf32>, vector<32x32xf32>, vector<1x32xf32> -> vector<1x32xf32>
    %cst_48 = arith.constant dense<0.000000e+00> : vector<1x32xf32>
    %106 = tpu.matmul %103, %17, %cst_48 {dimension_numbers = #tpu.dot_dimension_numbers<[1], [0], [0], [1], [0, 0, 1, 1], [], []>} : vector<1x32xf32>, vector<32x32xf32>, vector<1x32xf32> -> vector<1x32xf32>
    %cst_49 = arith.constant dense<0.000000e+00> : vector<1x32xf32>
    %107 = tpu.matmul %103, %18, %cst_49 {dimension_numbers = #tpu.dot_dimension_numbers<[1], [0], [0], [1], [0, 0, 1, 1], [], []>} : vector<1x32xf32>, vector<32x32xf32>, vector<1x32xf32> -> vector<1x32xf32>
    %108 = arith.addf %107, %19 : vector<1x32xf32>
    %109 = vector.extract_strided_slice %5 {offsets = [3, 0], sizes = [1, 32], strides = [1, 1]} : vector<8x32xf32> to vector<1x32xf32>
    %110 = arith.addf %109, %105 : vector<1x32xf32>
    %111 = arith.negf %110 : vector<1x32xf32>
    %112 = math.exp %111 : vector<1x32xf32>
    %cst_50 = arith.constant 1.000000e+00 : f32
    %113 = vector.broadcast %cst_50 : f32 to vector<1x32xf32>
    %114 = arith.addf %113, %112 : vector<1x32xf32>
    %115 = arith.divf %113, %114 : vector<1x32xf32>
    %116 = vector.extract_strided_slice %10 {offsets = [3, 0], sizes = [1, 32], strides = [1, 1]} : vector<8x32xf32> to vector<1x32xf32>
    %117 = arith.addf %116, %106 : vector<1x32xf32>
    %118 = arith.negf %117 : vector<1x32xf32>
    %119 = math.exp %118 : vector<1x32xf32>
    %cst_51 = arith.constant 1.000000e+00 : f32
    %120 = vector.broadcast %cst_51 : f32 to vector<1x32xf32>
    %121 = arith.addf %120, %119 : vector<1x32xf32>
    %122 = arith.divf %120, %121 : vector<1x32xf32>
    %123 = vector.extract_strided_slice %15 {offsets = [3, 0], sizes = [1, 32], strides = [1, 1]} : vector<8x32xf32> to vector<1x32xf32>
    %124 = arith.mulf %115, %108 : vector<1x32xf32>
    %125 = arith.addf %123, %124 : vector<1x32xf32>
    %126 = math.tanh %125 : vector<1x32xf32>
    %cst_52 = arith.constant 1.000000e+00 : f32
    %127 = vector.broadcast %cst_52 : f32 to vector<1x32xf32>
    %128 = arith.subf %127, %122 : vector<1x32xf32>
    %129 = arith.mulf %128, %126 : vector<1x32xf32>
    %130 = arith.mulf %122, %103 : vector<1x32xf32>
    %131 = arith.addf %129, %130 : vector<1x32xf32>
    %c3 = arith.constant 3 : index
    %c0_53 = arith.constant 0 : index
    %132 = vector.load %arg17[%c3, %c0_53] : memref<8x32xf32, #tpu.memory_space<vmem>>, vector<1x32xf32>
    tpu.vector_store %arg17[%c3, %c0_53], %131 {strides = array<i32>} : memref<8x32xf32, #tpu.memory_space<vmem>>, vector<1x32xf32>,
    %cst_54 = arith.constant dense<0.000000e+00> : vector<1x32xf32>
    %133 = tpu.matmul %131, %16, %cst_54 {dimension_numbers = #tpu.dot_dimension_numbers<[1], [0], [0], [1], [0, 0, 1, 1], [], []>} : vector<1x32xf32>, vector<32x32xf32>, vector<1x32xf32> -> vector<1x32xf32>
    %cst_55 = arith.constant dense<0.000000e+00> : vector<1x32xf32>
    %134 = tpu.matmul %131, %17, %cst_55 {dimension_numbers = #tpu.dot_dimension_numbers<[1], [0], [0], [1], [0, 0, 1, 1], [], []>} : vector<1x32xf32>, vector<32x32xf32>, vector<1x32xf32> -> vector<1x32xf32>
    %cst_56 = arith.constant dense<0.000000e+00> : vector<1x32xf32>
    %135 = tpu.matmul %131, %18, %cst_56 {dimension_numbers = #tpu.dot_dimension_numbers<[1], [0], [0], [1], [0, 0, 1, 1], [], []>} : vector<1x32xf32>, vector<32x32xf32>, vector<1x32xf32> -> vector<1x32xf32>
    %136 = arith.addf %135, %19 : vector<1x32xf32>
    %137 = vector.extract_strided_slice %5 {offsets = [4, 0], sizes = [1, 32], strides = [1, 1]} : vector<8x32xf32> to vector<1x32xf32>
    %138 = arith.addf %137, %133 : vector<1x32xf32>
    %139 = arith.negf %138 : vector<1x32xf32>
    %140 = math.exp %139 : vector<1x32xf32>
    %cst_57 = arith.constant 1.000000e+00 : f32
    %141 = vector.broadcast %cst_57 : f32 to vector<1x32xf32>
    %142 = arith.addf %141, %140 : vector<1x32xf32>
    %143 = arith.divf %141, %142 : vector<1x32xf32>
    %144 = vector.extract_strided_slice %10 {offsets = [4, 0], sizes = [1, 32], strides = [1, 1]} : vector<8x32xf32> to vector<1x32xf32>
    %145 = arith.addf %144, %134 : vector<1x32xf32>
    %146 = arith.negf %145 : vector<1x32xf32>
    %147 = math.exp %146 : vector<1x32xf32>
    %cst_58 = arith.constant 1.000000e+00 : f32
    %148 = vector.broadcast %cst_58 : f32 to vector<1x32xf32>
    %149 = arith.addf %148, %147 : vector<1x32xf32>
    %150 = arith.divf %148, %149 : vector<1x32xf32>
    %151 = vector.extract_strided_slice %15 {offsets = [4, 0], sizes = [1, 32], strides = [1, 1]} : vector<8x32xf32> to vector<1x32xf32>
    %152 = arith.mulf %143, %136 : vector<1x32xf32>
    %153 = arith.addf %151, %152 : vector<1x32xf32>
    %154 = math.tanh %153 : vector<1x32xf32>
    %cst_59 = arith.constant 1.000000e+00 : f32
    %155 = vector.broadcast %cst_59 : f32 to vector<1x32xf32>
    %156 = arith.subf %155, %150 : vector<1x32xf32>
    %157 = arith.mulf %156, %154 : vector<1x32xf32>
    %158 = arith.mulf %150, %131 : vector<1x32xf32>
    %159 = arith.addf %157, %158 : vector<1x32xf32>
    %c4 = arith.constant 4 : index
    %c0_60 = arith.constant 0 : index
    %160 = vector.load %arg17[%c4, %c0_60] : memref<8x32xf32, #tpu.memory_space<vmem>>, vector<1x32xf32>
    tpu.vector_store %arg17[%c4, %c0_60], %159 {strides = array<i32>} : memref<8x32xf32, #tpu.memory_space<vmem>>, vector<1x32xf32>,
    %cst_61 = arith.constant dense<0.000000e+00> : vector<1x32xf32>
    %161 = tpu.matmul %159, %16, %cst_61 {dimension_numbers = #tpu.dot_dimension_numbers<[1], [0], [0], [1], [0, 0, 1, 1], [], []>} : vector<1x32xf32>, vector<32x32xf32>, vector<1x32xf32> -> vector<1x32xf32>
    %cst_62 = arith.constant dense<0.000000e+00> : vector<1x32xf32>
    %162 = tpu.matmul %159, %17, %cst_62 {dimension_numbers = #tpu.dot_dimension_numbers<[1], [0], [0], [1], [0, 0, 1, 1], [], []>} : vector<1x32xf32>, vector<32x32xf32>, vector<1x32xf32> -> vector<1x32xf32>
    %cst_63 = arith.constant dense<0.000000e+00> : vector<1x32xf32>
    %163 = tpu.matmul %159, %18, %cst_63 {dimension_numbers = #tpu.dot_dimension_numbers<[1], [0], [0], [1], [0, 0, 1, 1], [], []>} : vector<1x32xf32>, vector<32x32xf32>, vector<1x32xf32> -> vector<1x32xf32>
    %164 = arith.addf %163, %19 : vector<1x32xf32>
    %165 = vector.extract_strided_slice %5 {offsets = [5, 0], sizes = [1, 32], strides = [1, 1]} : vector<8x32xf32> to vector<1x32xf32>
    %166 = arith.addf %165, %161 : vector<1x32xf32>
    %167 = arith.negf %166 : vector<1x32xf32>
    %168 = math.exp %167 : vector<1x32xf32>
    %cst_64 = arith.constant 1.000000e+00 : f32
    %169 = vector.broadcast %cst_64 : f32 to vector<1x32xf32>
    %170 = arith.addf %169, %168 : vector<1x32xf32>
    %171 = arith.divf %169, %170 : vector<1x32xf32>
    %172 = vector.extract_strided_slice %10 {offsets = [5, 0], sizes = [1, 32], strides = [1, 1]} : vector<8x32xf32> to vector<1x32xf32>
    %173 = arith.addf %172, %162 : vector<1x32xf32>
    %174 = arith.negf %173 : vector<1x32xf32>
    %175 = math.exp %174 : vector<1x32xf32>
    %cst_65 = arith.constant 1.000000e+00 : f32
    %176 = vector.broadcast %cst_65 : f32 to vector<1x32xf32>
    %177 = arith.addf %176, %175 : vector<1x32xf32>
    %178 = arith.divf %176, %177 : vector<1x32xf32>
    %179 = vector.extract_strided_slice %15 {offsets = [5, 0], sizes = [1, 32], strides = [1, 1]} : vector<8x32xf32> to vector<1x32xf32>
    %180 = arith.mulf %171, %164 : vector<1x32xf32>
    %181 = arith.addf %179, %180 : vector<1x32xf32>
    %182 = math.tanh %181 : vector<1x32xf32>
    %cst_66 = arith.constant 1.000000e+00 : f32
    %183 = vector.broadcast %cst_66 : f32 to vector<1x32xf32>
    %184 = arith.subf %183, %178 : vector<1x32xf32>
    %185 = arith.mulf %184, %182 : vector<1x32xf32>
    %186 = arith.mulf %178, %159 : vector<1x32xf32>
    %187 = arith.addf %185, %186 : vector<1x32xf32>
    %c5 = arith.constant 5 : index
    %c0_67 = arith.constant 0 : index
    %188 = vector.load %arg17[%c5, %c0_67] : memref<8x32xf32, #tpu.memory_space<vmem>>, vector<1x32xf32>
    tpu.vector_store %arg17[%c5, %c0_67], %187 {strides = array<i32>} : memref<8x32xf32, #tpu.memory_space<vmem>>, vector<1x32xf32>,
    %cst_68 = arith.constant dense<0.000000e+00> : vector<1x32xf32>
    %189 = tpu.matmul %187, %16, %cst_68 {dimension_numbers = #tpu.dot_dimension_numbers<[1], [0], [0], [1], [0, 0, 1, 1], [], []>} : vector<1x32xf32>, vector<32x32xf32>, vector<1x32xf32> -> vector<1x32xf32>
    %cst_69 = arith.constant dense<0.000000e+00> : vector<1x32xf32>
    %190 = tpu.matmul %187, %17, %cst_69 {dimension_numbers = #tpu.dot_dimension_numbers<[1], [0], [0], [1], [0, 0, 1, 1], [], []>} : vector<1x32xf32>, vector<32x32xf32>, vector<1x32xf32> -> vector<1x32xf32>
    %cst_70 = arith.constant dense<0.000000e+00> : vector<1x32xf32>
    %191 = tpu.matmul %187, %18, %cst_70 {dimension_numbers = #tpu.dot_dimension_numbers<[1], [0], [0], [1], [0, 0, 1, 1], [], []>} : vector<1x32xf32>, vector<32x32xf32>, vector<1x32xf32> -> vector<1x32xf32>
    %192 = arith.addf %191, %19 : vector<1x32xf32>
    %193 = vector.extract_strided_slice %5 {offsets = [6, 0], sizes = [1, 32], strides = [1, 1]} : vector<8x32xf32> to vector<1x32xf32>
    %194 = arith.addf %193, %189 : vector<1x32xf32>
    %195 = arith.negf %194 : vector<1x32xf32>
    %196 = math.exp %195 : vector<1x32xf32>
    %cst_71 = arith.constant 1.000000e+00 : f32
    %197 = vector.broadcast %cst_71 : f32 to vector<1x32xf32>
    %198 = arith.addf %197, %196 : vector<1x32xf32>
    %199 = arith.divf %197, %198 : vector<1x32xf32>
    %200 = vector.extract_strided_slice %10 {offsets = [6, 0], sizes = [1, 32], strides = [1, 1]} : vector<8x32xf32> to vector<1x32xf32>
    %201 = arith.addf %200, %190 : vector<1x32xf32>
    %202 = arith.negf %201 : vector<1x32xf32>
    %203 = math.exp %202 : vector<1x32xf32>
    %cst_72 = arith.constant 1.000000e+00 : f32
    %204 = vector.broadcast %cst_72 : f32 to vector<1x32xf32>
    %205 = arith.addf %204, %203 : vector<1x32xf32>
    %206 = arith.divf %204, %205 : vector<1x32xf32>
    %207 = vector.extract_strided_slice %15 {offsets = [6, 0], sizes = [1, 32], strides = [1, 1]} : vector<8x32xf32> to vector<1x32xf32>
    %208 = arith.mulf %199, %192 : vector<1x32xf32>
    %209 = arith.addf %207, %208 : vector<1x32xf32>
    %210 = math.tanh %209 : vector<1x32xf32>
    %cst_73 = arith.constant 1.000000e+00 : f32
    %211 = vector.broadcast %cst_73 : f32 to vector<1x32xf32>
    %212 = arith.subf %211, %206 : vector<1x32xf32>
    %213 = arith.mulf %212, %210 : vector<1x32xf32>
    %214 = arith.mulf %206, %187 : vector<1x32xf32>
    %215 = arith.addf %213, %214 : vector<1x32xf32>
    %c6 = arith.constant 6 : index
    %c0_74 = arith.constant 0 : index
    %216 = vector.load %arg17[%c6, %c0_74] : memref<8x32xf32, #tpu.memory_space<vmem>>, vector<1x32xf32>
    tpu.vector_store %arg17[%c6, %c0_74], %215 {strides = array<i32>} : memref<8x32xf32, #tpu.memory_space<vmem>>, vector<1x32xf32>,
    %cst_75 = arith.constant dense<0.000000e+00> : vector<1x32xf32>
    %217 = tpu.matmul %215, %16, %cst_75 {dimension_numbers = #tpu.dot_dimension_numbers<[1], [0], [0], [1], [0, 0, 1, 1], [], []>} : vector<1x32xf32>, vector<32x32xf32>, vector<1x32xf32> -> vector<1x32xf32>
    %cst_76 = arith.constant dense<0.000000e+00> : vector<1x32xf32>
    %218 = tpu.matmul %215, %17, %cst_76 {dimension_numbers = #tpu.dot_dimension_numbers<[1], [0], [0], [1], [0, 0, 1, 1], [], []>} : vector<1x32xf32>, vector<32x32xf32>, vector<1x32xf32> -> vector<1x32xf32>
    %cst_77 = arith.constant dense<0.000000e+00> : vector<1x32xf32>
    %219 = tpu.matmul %215, %18, %cst_77 {dimension_numbers = #tpu.dot_dimension_numbers<[1], [0], [0], [1], [0, 0, 1, 1], [], []>} : vector<1x32xf32>, vector<32x32xf32>, vector<1x32xf32> -> vector<1x32xf32>
    %220 = arith.addf %219, %19 : vector<1x32xf32>
    %221 = vector.extract_strided_slice %5 {offsets = [7, 0], sizes = [1, 32], strides = [1, 1]} : vector<8x32xf32> to vector<1x32xf32>
    %222 = arith.addf %221, %217 : vector<1x32xf32>
    %223 = arith.negf %222 : vector<1x32xf32>
    %224 = math.exp %223 : vector<1x32xf32>
    %cst_78 = arith.constant 1.000000e+00 : f32
    %225 = vector.broadcast %cst_78 : f32 to vector<1x32xf32>
    %226 = arith.addf %225, %224 : vector<1x32xf32>
    %227 = arith.divf %225, %226 : vector<1x32xf32>
    %228 = vector.extract_strided_slice %10 {offsets = [7, 0], sizes = [1, 32], strides = [1, 1]} : vector<8x32xf32> to vector<1x32xf32>
    %229 = arith.addf %228, %218 : vector<1x32xf32>
    %230 = arith.negf %229 : vector<1x32xf32>
    %231 = math.exp %230 : vector<1x32xf32>
    %cst_79 = arith.constant 1.000000e+00 : f32
    %232 = vector.broadcast %cst_79 : f32 to vector<1x32xf32>
    %233 = arith.addf %232, %231 : vector<1x32xf32>
    %234 = arith.divf %232, %233 : vector<1x32xf32>
    %235 = vector.extract_strided_slice %15 {offsets = [7, 0], sizes = [1, 32], strides = [1, 1]} : vector<8x32xf32> to vector<1x32xf32>
    %236 = arith.mulf %227, %220 : vector<1x32xf32>
    %237 = arith.addf %235, %236 : vector<1x32xf32>
    %238 = math.tanh %237 : vector<1x32xf32>
    %cst_80 = arith.constant 1.000000e+00 : f32
    %239 = vector.broadcast %cst_80 : f32 to vector<1x32xf32>
    %240 = arith.subf %239, %234 : vector<1x32xf32>
    %241 = arith.mulf %240, %238 : vector<1x32xf32>
    %242 = arith.mulf %234, %215 : vector<1x32xf32>
    %243 = arith.addf %241, %242 : vector<1x32xf32>
    %c7 = arith.constant 7 : index
    %c0_81 = arith.constant 0 : index
    %244 = vector.load %arg17[%c7, %c0_81] : memref<8x32xf32, #tpu.memory_space<vmem>>, vector<1x32xf32>
    tpu.vector_store %arg17[%c7, %c0_81], %243 {strides = array<i32>} : memref<8x32xf32, #tpu.memory_space<vmem>>, vector<1x32xf32>,
    %c0_82 = arith.constant 0 : index
    %c0_83 = arith.constant 0 : index
    %245 = vector.load %arg16[%c0_82, %c0_83] : memref<1x32xf32, #tpu.memory_space<vmem>>, vector<1x32xf32>
    tpu.vector_store %arg16[%c0_82, %c0_83], %243 {strides = array<i32>} : memref<1x32xf32, #tpu.memory_space<vmem>>, vector<1x32xf32>,
    %c0_84 = arith.constant 0 : index
    %c0_85 = arith.constant 0 : index
    %246 = vector.load %arg17[%c0_84, %c0_85] : memref<8x32xf32, #tpu.memory_space<vmem>>, vector<8x32xf32>
    %c0_86 = arith.constant 0 : index
    %c0_87 = arith.constant 0 : index
    %247 = vector.load %arg13[%c0_86, %c0_87] : memref<32x16xf32, #tpu.memory_space<vmem>>, vector<32x16xf32>
    %cst_88 = arith.constant dense<0.000000e+00> : vector<8x16xf32>
    %248 = tpu.matmul %246, %247, %cst_88 {dimension_numbers = #tpu.dot_dimension_numbers<[1], [0], [0], [1], [0, 0, 1, 1], [], []>} : vector<8x32xf32>, vector<32x16xf32>, vector<8x16xf32> -> vector<8x16xf32>
    %c0_89 = arith.constant 0 : index
    %c0_90 = arith.constant 0 : index
    %249 = vector.load %arg14[%c0_89, %c0_90] : memref<1x16xf32, #tpu.memory_space<vmem>>, vector<1x16xf32>
    %250 = vector.broadcast %249 : vector<1x16xf32> to vector<8x16xf32>
    %251 = arith.addf %248, %250 : vector<8x16xf32>
    %c0_91 = arith.constant 0 : index
    %c0_92 = arith.constant 0 : index
    %252 = vector.load %arg2[%c0_91, %c0_92] : memref<8x16xf32, #tpu.memory_space<vmem>>, vector<8x16xf32>
    %cst_93 = arith.constant 3.000000e-01 : f32
    %253 = vector.broadcast %cst_93 : f32 to vector<8x16xf32>
    %254 = arith.cmpf oge, %252, %253 : vector<8x16xf32>
    %cst_94 = arith.constant 1.42857146 : f32
    %255 = vector.broadcast %cst_94 : f32 to vector<8x16xf32>
    %256 = arith.mulf %251, %255 : vector<8x16xf32>
    %cst_95 = arith.constant 0.000000e+00 : f32
    %257 = vector.broadcast %cst_95 : f32 to vector<8x16xf32>
    %258 = arith.select %254, %256, %257 : vector<8x16xi1>, vector<8x16xf32>
    %cst_96 = arith.constant dense<0xFF800000> : vector<8xf32>
    %259 = vector.multi_reduction <maximumf>, %258, %cst_96 [1] : vector<8x16xf32> to vector<8xf32>
    %260 = vector.shape_cast %259 : vector<8xf32> to vector<8x1xf32>
    %261 = vector.broadcast %260 : vector<8x1xf32> to vector<8x16xf32>
    %262 = arith.subf %258, %261 : vector<8x16xf32>
    %263 = math.exp %262 : vector<8x16xf32>
    %cst_97 = arith.constant dense<0.000000e+00> : vector<8xf32>
    %264 = vector.multi_reduction <add>, %263, %cst_97 [1] : vector<8x16xf32> to vector<8xf32>
    %265 = vector.shape_cast %264 : vector<8xf32> to vector<8x1xf32>
    %cst_98 = arith.constant 1.000000e+00 : f32
    %266 = vector.broadcast %cst_98 : f32 to vector<8x1xf32>
    %267 = arith.divf %266, %265 : vector<8x1xf32>
    %268 = vector.broadcast %267 : vector<8x1xf32> to vector<8x16xf32>
    %269 = arith.mulf %263, %268 : vector<8x16xf32>
    %c0_99 = arith.constant 0 : index
    %c0_100 = arith.constant 0 : index
    %270 = vector.load %arg15[%c0_99, %c0_100] : memref<8x16xf32, #tpu.memory_space<vmem>>, vector<8x16xf32>
    tpu.vector_store %arg15[%c0_99, %c0_100], %269 {strides = array<i32>} : memref<8x16xf32, #tpu.memory_space<vmem>>, vector<8x16xf32>,
    return
  }
}

</mosaic_0001>

<llo_original>
// kernel: charrnn_forward.1
$region0: #{charrnn_forward.1}
  #allocation0 [shape = 'u32[]', space=smem, size = 0x4, offset = 0x4, fixed_abs, tag = 'smem constant byte address 0x4 - core index']
  #allocation1 [shape = 'u32[144,128]{1,0:T(1,128)}', space=vmem, size = 0x12000, scoped, tag = 'internal scratch']
  #allocation2 [shape = 'f32[8,32]{1,0:T(8,128)}', space=vmem, size = 0x1000, scoped, tag = 'scratch operand']
  %s0 = inlined_call_operand.hbm [shape: f32[8,16], index: 0, kind: input, shape index: {}]
  %s1 = inlined_call_operand.hbm [shape: f32[1,32], index: 1, kind: input, shape index: {}]
  %s2 = inlined_call_operand.hbm [shape: f32[8,16], index: 2, kind: input, shape index: {}]
  %s3 = inlined_call_operand.hbm [shape: f32[16,32], index: 3, kind: input, shape index: {}]
  %s4 = inlined_call_operand.hbm [shape: f32[16,32], index: 4, kind: input, shape index: {}]
  %s5 = inlined_call_operand.hbm [shape: f32[16,32], index: 5, kind: input, shape index: {}]
  %s6 = inlined_call_operand.vmem [shape: f32[32,32], index: 6, kind: input, shape index: {}]
  %s7 = inlined_call_operand.vmem [shape: f32[32,32], index: 7, kind: input, shape index: {}]
  %s8 = inlined_call_operand.hbm [shape: f32[32,32], index: 8, kind: input, shape index: {}]
  %s9 = inlined_call_operand.hbm [shape: f32[1,32], index: 9, kind: input, shape index: {}]
  %s10 = inlined_call_operand.hbm [shape: f32[1,32], index: 10, kind: input, shape index: {}]
  %s11 = inlined_call_operand.hbm [shape: f32[1,32], index: 11, kind: input, shape index: {}]
  %s12 = inlined_call_operand.hbm [shape: f32[1,32], index: 12, kind: input, shape index: {}]
  %s13 = inlined_call_operand.vmem [shape: f32[32,16], index: 13, kind: input, shape index: {}]
  %s14 = inlined_call_operand.hbm [shape: f32[1,16], index: 14, kind: input, shape index: {}]
  %s15 = inlined_call_operand.vmem [shape: f32[8,16], index: 15, kind: output, shape index: {0}]
  %s16 = inlined_call_operand.hbm [shape: f32[1,32], index: 16, kind: output, shape index: {1}]
  %17 = xla_tuple %s15, %s16
  %s18 = sld [smem:[#allocation0]]
  $region126: #{charrnn_forward.1} parent=0
    _
  %s20 = ssub.s32 1, %s18
  %s21 = scalar_select 0, %s20, %s18
  $region1: #{charrnn_forward.1} parent=0
    #allocation3 [shape = 'u8[4096]{0}', space=vmem, size = 0x1000, scoped, tag = 'input window, operand 0, single buffered']
    #allocation4 [shape = 's32[1]{0}', space=sflag, size = 0x4, scoped, tag = 'scoped memory for charrnn_forward.1']
    #allocation5 [shape = 's32[1]{0}', space=sflag, size = 0x4, scoped, tag = 'scoped memory for charrnn_forward.1']
    #allocation6 [shape = 'u8[512]{0}', space=vmem, size = 0x400, scoped, tag = 'input window, operand 1, single buffered']
    #allocation7 [shape = 's32[1]{0}', space=sflag, size = 0x4, scoped, tag = 'scoped memory for charrnn_forward.1']
    #allocation8 [shape = 'u8[4096]{0}', space=vmem, size = 0x1000, scoped, tag = 'input window, operand 2, single buffered']
    #allocation9 [shape = 'u8[8192]{0}', space=vmem, size = 0x2000, scoped, tag = 'input window, operand 3, single buffered']
    #allocation10 [shape = 's32[1]{0}', space=sflag, size = 0x4, scoped, tag = 'scoped memory for charrnn_forward.1']
    #allocation11 [shape = 'u8[8192]{0}', space=vmem, size = 0x2000, scoped, tag = 'input window, operand 4, single buffered']
    #allocation12 [shape = 'u8[8192]{0}', space=vmem, size = 0x2000, scoped, tag = 'input window, operand 5, single buffered']
    #allocation13 [shape = 's32[1]{0}', space=sflag, size = 0x4, scoped, tag = 'scoped memory for charrnn_forward.1']
    #allocation14 [shape = 'u8[16384]{0}', space=vmem, size = 0x4000, scoped, tag = 'input window, operand 8, single buffered']
    #allocation15 [shape = 'u8[512]{0}', space=vmem, size = 0x400, scoped, tag = 'input window, operand 9, single buffered']
    #allocation16 [shape = 's32[1]{0}', space=sflag, size = 0x4, scoped, tag = 'scoped memory for charrnn_forward.1']
    #allocation17 [shape = 'u8[512]{0}', space=vmem, size = 0x400, scoped, tag = 'input window, operand 10, single buffered']
    #allocation18 [shape = 'u8[512]{0}', space=vmem, size = 0x400, scoped, tag = 'input window, operand 11, single buffered']
    #allocation19 [shape = 's32[1]{0}', space=sflag, size = 0x4, scoped, tag = 'scoped memory for charrnn_forward.1']
    #allocation20 [shape = 'u8[512]{0}', space=vmem, size = 0x400, scoped, tag = 'input window, operand 12, single buffered']
    #allocation21 [shape = 'u8[512]{0}', space=vmem, size = 0x400, scoped, tag = 'input window, operand 14, single buffered']
    #allocation22 [shape = 's32[1]{0}', space=sflag, size = 0x4, scoped, tag = 'scoped memory for charrnn_forward.1']
    #allocation23 [shape = 'u8[512]{0}', space=vmem, size = 0x400, scoped, tag = 'output window, operand 1, single buffered']
    %22 = vsyncpa [#allocation4], 0
    %23 = vsyncpa [#allocation7], 0
    %24 = vsyncpa [#allocation10], 0
    %25 = vsyncpa [#allocation13], 0
    %26 = vsyncpa [#allocation16], 0
    %27 = vsyncpa [#allocation19], 0
    %28 = vsyncpa [#allocation22], 0
    %29 = vsyncpa [#allocation5], 0
    // Predicated region
    $region2: #{charrnn_forward.1} parent=1 // pred_check
      _
    $region3: #{charrnn_forward.1} parent=1 // pred_check_branch
      %31 = sbr.rel (0) target = $region5
    $region4: #{charrnn_forward.1} parent=1 // pred_region
      %s33 = ssub.s32 128, 128
      %34 = vsyncadd [#allocation4], %s33
      %s36 = sshll.u32 [#allocation3], 4
      %s37 = int_to_ptr.vmem [resolvable:$true] %s36
      %39 = dma.hbm_to_vmem [thread:$0]  %s0, 128, %s37, [#allocation4]
    $region5: #{charrnn_forward.1} parent=1 // pred_fallthru
      _
    // Predicated region
    $region6: #{charrnn_forward.1} parent=1 // pred_check
      _
    $region7: #{charrnn_forward.1} parent=1 // pred_check_branch
      %41 = sbr.rel (0) target = $region9
    $region8: #{charrnn_forward.1} parent=1 // pred_region
      %s43 = ssub.s32 16, 16
      %44 = vsyncadd [#allocation7], %s43
      %s46 = sshll.u32 [#allocation6], 4
      %s47 = int_to_ptr.vmem [resolvable:$true] %s46
      %49 = dma.hbm_to_vmem [thread:$0]  %s1, 16, %s47, [#allocation7]
    $region9: #{charrnn_forward.1} parent=1 // pred_fallthru
      _
    // Predicated region
    $region10: #{charrnn_forward.1} parent=1 // pred_check
      _
    $region11: #{charrnn_forward.1} parent=1 // pred_check_branch
      %51 = sbr.rel (0) target = $region13
    $region12: #{charrnn_forward.1} parent=1 // pred_region
      %s53 = ssub.s32 128, 128
      %54 = vsyncadd [#allocation7], %s53
      %s56 = sshll.u32 [#allocation8], 4
      %s57 = int_to_ptr.vmem [resolvable:$true] %s56
      %59 = dma.hbm_to_vmem [thread:$0]  %s2, 128, %s57, [#allocation7]
    $region13: #{charrnn_forward.1} parent=1 // pred_fallthru
      _
    // Predicated region
    $region14: #{charrnn_forward.1} parent=1 // pred_check
      _
    $region15: #{charrnn_forward.1} parent=1 // pred_check_branch
      %61 = sbr.rel (0) target = $region17
    $region16: #{charrnn_forward.1} parent=1 // pred_region
      %s63 = ssub.s32 256, 256
      %64 = vsyncadd [#allocation10], %s63
      %s65 = sshll.u32 [#allocation9], 4
      %s66 = int_to_ptr.vmem [resolvable:$true] %s65
      %71 = dma.hbm_to_vmem [thread:$0]  %s3, 256, %s66, [#allocation10], 128, 128, 8
    $region17: #{charrnn_forward.1} parent=1 // pred_fallthru
      _
    // Predicated region
    $region18: #{charrnn_forward.1} parent=1 // pred_check
      _
    $region19: #{charrnn_forward.1} parent=1 // pred_check_branch
      %73 = sbr.rel (0) target = $region21
    $region20: #{charrnn_forward.1} parent=1 // pred_region
      %s75 = ssub.s32 256, 256
      %76 = vsyncadd [#allocation10], %s75
      %s77 = sshll.u32 [#allocation11], 4
      %s78 = int_to_ptr.vmem [resolvable:$true] %s77
      %83 = dma.hbm_to_vmem [thread:$0]  %s4, 256, %s78, [#allocation10], 128, 128, 8
    $region21: #{charrnn_forward.1} parent=1 // pred_fallthru
      _
    // Predicated region
    $region22: #{charrnn_forward.1} parent=1 // pred_check
      _
    $region23: #{charrnn_forward.1} parent=1 // pred_check_branch
      %85 = sbr.rel (0) target = $region25
    $region24: #{charrnn_forward.1} parent=1 // pred_region
      %s87 = ssub.s32 256, 256
      %88 = vsyncadd [#allocation13], %s87
      %s89 = sshll.u32 [#allocation12], 4
      %s90 = int_to_ptr.vmem [resolvable:$true] %s89
      %95 = dma.hbm_to_vmem [thread:$0]  %s5, 256, %s90, [#allocation13], 128, 128, 8
    $region25: #{charrnn_forward.1} parent=1 // pred_fallthru
      _
    // Predicated region
    $region26: #{charrnn_forward.1} parent=1 // pred_check
      _
    $region27: #{charrnn_forward.1} parent=1 // pred_check_branch
      %97 = sbr.rel (0) target = $region29
    $region28: #{charrnn_forward.1} parent=1 // pred_region
      _
    $region29: #{charrnn_forward.1} parent=1 // pred_fallthru
      _
    // Predicated region
    $region30: #{charrnn_forward.1} parent=1 // pred_check
      _
    $region31: #{charrnn_forward.1} parent=1 // pred_check_branch
      %99 = sbr.rel (0) target = $region33
    $region32: #{charrnn_forward.1} parent=1 // pred_region
      _
    $region33: #{charrnn_forward.1} parent=1 // pred_fallthru
      _
    // Predicated region
    $region34: #{charrnn_forward.1} parent=1 // pred_check
      _
    $region35: #{charrnn_forward.1} parent=1 // pred_check_branch
      %101 = sbr.rel (0) target = $region37
    $region36: #{charrnn_forward.1} parent=1 // pred_region
      %s103 = ssub.s32 512, 512
      %104 = vsyncadd [#allocation13], %s103
      %s105 = sshll.u32 [#allocation14], 4
      %s106 = int_to_ptr.vmem [resolvable:$true] %s105
      %111 = dma.hbm_to_vmem [thread:$0]  %s8, 512, %s106, [#allocation13], 128, 128, 8
    $region37: #{charrnn_forward.1} parent=1 // pred_fallthru
      _
    // Predicated region
    $region38: #{charrnn_forward.1} parent=1 // pred_check
      _
    $region39: #{charrnn_forward.1} parent=1 // pred_check_branch
      %113 = sbr.rel (0) target = $region41
    $region40: #{charrnn_forward.1} parent=1 // pred_region
      %s115 = ssub.s32 16, 16
      %116 = vsyncadd [#allocation16], %s115
      %s118 = sshll.u32 [#allocation15], 4
      %s119 = int_to_ptr.vmem [resolvable:$true] %s118
      %121 = dma.hbm_to_vmem [thread:$0]  %s9, 16, %s119, [#allocation16]
    $region41: #{charrnn_forward.1} parent=1 // pred_fallthru
      _
    // Predicated region
    $region42: #{charrnn_forward.1} parent=1 // pred_check
      _
    $region43: #{charrnn_forward.1} parent=1 // pred_check_branch
      %123 = sbr.rel (0) target = $region45
    $region44: #{charrnn_forward.1} parent=1 // pred_region
      %s125 = ssub.s32 16, 16
      %126 = vsyncadd [#allocation16], %s125
      %s128 = sshll.u32 [#allocation17], 4
      %s129 = int_to_ptr.vmem [resolvable:$true] %s128
      %131 = dma.hbm_to_vmem [thread:$0]  %s10, 16, %s129, [#allocation16]
    $region45: #{charrnn_forward.1} parent=1 // pred_fallthru
      _
    // Predicated region
    $region46: #{charrnn_forward.1} parent=1 // pred_check
      _
    $region47: #{charrnn_forward.1} parent=1 // pred_check_branch
      %133 = sbr.rel (0) target = $region49
    $region48: #{charrnn_forward.1} parent=1 // pred_region
      %s135 = ssub.s32 16, 16
      %136 = vsyncadd [#allocation19], %s135
      %s138 = sshll.u32 [#allocation18], 4
      %s139 = int_to_ptr.vmem [resolvable:$true] %s138
      %141 = dma.hbm_to_vmem [thread:$0]  %s11, 16, %s139, [#allocation19]
    $region49: #{charrnn_forward.1} parent=1 // pred_fallthru
      _
    // Predicated region
    $region50: #{charrnn_forward.1} parent=1 // pred_check
      _
    $region51: #{charrnn_forward.1} parent=1 // pred_check_branch
      %143 = sbr.rel (0) target = $region53
    $region52: #{charrnn_forward.1} parent=1 // pred_region
      %s145 = ssub.s32 16, 16
      %146 = vsyncadd [#allocation19], %s145
      %s148 = sshll.u32 [#allocation20], 4
      %s149 = int_to_ptr.vmem [resolvable:$true] %s148
      %151 = dma.hbm_to_vmem [thread:$0]  %s12, 16, %s149, [#allocation19]
    $region53: #{charrnn_forward.1} parent=1 // pred_fallthru
      _
    // Predicated region
    $region54: #{charrnn_forward.1} parent=1 // pred_check
      _
    $region55: #{charrnn_forward.1} parent=1 // pred_check_branch
      %153 = sbr.rel (0) target = $region57
    $region56: #{charrnn_forward.1} parent=1 // pred_region
      _
    $region57: #{charrnn_forward.1} parent=1 // pred_fallthru
      _
    // Predicated region
    $region58: #{charrnn_forward.1} parent=1 // pred_check
      _
    $region59: #{charrnn_forward.1} parent=1 // pred_check_branch
      %155 = sbr.rel (0) target = $region61
    $region60: #{charrnn_forward.1} parent=1 // pred_region
      %s157 = ssub.s32 16, 16
      %158 = vsyncadd [#allocation22], %s157
      %s160 = sshll.u32 [#allocation21], 4
      %s161 = int_to_ptr.vmem [resolvable:$true] %s160
      %163 = dma.hbm_to_vmem [thread:$0]  %s14, 16, %s161, [#allocation22]
    $region61: #{charrnn_forward.1} parent=1 // pred_fallthru
      _
    // Predicated region
    $region62: #{charrnn_forward.1} parent=1 // pred_check
      _
    $region63: #{charrnn_forward.1} parent=1 // pred_check_branch
      %165 = sbr.rel (0) target = $region65
    $region64: #{charrnn_forward.1} parent=1 // pred_region
      %166 = dma.done [#allocation4], 128
    $region65: #{charrnn_forward.1} parent=1 // pred_fallthru
      _
    // Predicated region
    $region66: #{charrnn_forward.1} parent=1 // pred_check
      _
    $region67: #{charrnn_forward.1} parent=1 // pred_check_branch
      %168 = sbr.rel (0) target = $region69
    $region68: #{charrnn_forward.1} parent=1 // pred_region
      %169 = dma.done [#allocation7], 16
    $region69: #{charrnn_forward.1} parent=1 // pred_fallthru
      _
    // Predicated region
    $region70: #{charrnn_forward.1} parent=1 // pred_check
      _
    $region71: #{charrnn_forward.1} parent=1 // pred_check_branch
      %171 = sbr.rel (0) target = $region73
    $region72: #{charrnn_forward.1} parent=1 // pred_region
      %172 = dma.done [#allocation7], 128
    $region73: #{charrnn_forward.1} parent=1 // pred_fallthru
      _
    // Predicated region
    $region74: #{charrnn_forward.1} parent=1 // pred_check
      _
    $region75: #{charrnn_forward.1} parent=1 // pred_check_branch
      %174 = sbr.rel (0) target = $region77
    $region76: #{charrnn_forward.1} parent=1 // pred_region
      %175 = dma.done [#allocation10], 256
    $region77: #{charrnn_forward.1} parent=1 // pred_fallthru
      _
    // Predicated region
    $region78: #{charrnn_forward.1} parent=1 // pred_check
      _
    $region79: #{charrnn_forward.1} parent=1 // pred_check_branch
      %177 = sbr.rel (0) target = $region81
    $region80: #{charrnn_forward.1} parent=1 // pred_region
      %178 = dma.done [#allocation10], 256
    $region81: #{charrnn_forward.1} parent=1 // pred_fallthru
      _
    // Predicated region
    $region82: #{charrnn_forward.1} parent=1 // pred_check
      _
    $region83: #{charrnn_forward.1} parent=1 // pred_check_branch
      %180 = sbr.rel (0) target = $region85
    $region84: #{charrnn_forward.1} parent=1 // pred_region
      %181 = dma.done [#allocation13], 256
    $region85: #{charrnn_forward.1} parent=1 // pred_fallthru
      _
    // Predicated region
    $region86: #{charrnn_forward.1} parent=1 // pred_check
      _
    $region87: #{charrnn_forward.1} parent=1 // pred_check_branch
      %183 = sbr.rel (0) target = $region89
    $region88: #{charrnn_forward.1} parent=1 // pred_region
      %184 = dma.done [#allocation13], 512
    $region89: #{charrnn_forward.1} parent=1 // pred_fallthru
      _
    // Predicated region
    $region90: #{charrnn_forward.1} parent=1 // pred_check
      _
    $region91: #{charrnn_forward.1} parent=1 // pred_check_branch
      %186 = sbr.rel (0) target = $region93
    $region92: #{charrnn_forward.1} parent=1 // pred_region
      %187 = dma.done [#allocation16], 16
    $region93: #{charrnn_forward.1} parent=1 // pred_fallthru
      _
    // Predicated region
    $region94: #{charrnn_forward.1} parent=1 // pred_check
      _
    $region95: #{charrnn_forward.1} parent=1 // pred_check_branch
      %189 = sbr.rel (0) target = $region97
    $region96: #{charrnn_forward.1} parent=1 // pred_region
      %190 = dma.done [#allocation16], 16
    $region97: #{charrnn_forward.1} parent=1 // pred_fallthru
      _
    // Predicated region
    $region98: #{charrnn_forward.1} parent=1 // pred_check
      _
    $region99: #{charrnn_forward.1} parent=1 // pred_check_branch
      %192 = sbr.rel (0) target = $region101
    $region100: #{charrnn_forward.1} parent=1 // pred_region
      %193 = dma.done [#allocation19], 16
    $region101: #{charrnn_forward.1} parent=1 // pred_fallthru
      _
    // Predicated region
    $region102: #{charrnn_forward.1} parent=1 // pred_check
      _
    $region103: #{charrnn_forward.1} parent=1 // pred_check_branch
      %195 = sbr.rel (0) target = $region105
    $region104: #{charrnn_forward.1} parent=1 // pred_region
      %196 = dma.done [#allocation19], 16
    $region105: #{charrnn_forward.1} parent=1 // pred_fallthru
      _
    // Predicated region
    $region106: #{charrnn_forward.1} parent=1 // pred_check
      _
    $region107: #{charrnn_forward.1} parent=1 // pred_check_branch
      %198 = sbr.rel (0) target = $region109
    $region108: #{charrnn_forward.1} parent=1 // pred_region
      %199 = dma.done [#allocation22], 16
    $region109: #{charrnn_forward.1} parent=1 // pred_fallthru
      _
    %v200 = vld [vmem:[#allocation3] sm:$0xff]
    %v201 = vld [vmem:[#allocation9] sm:$0xff]
    %v202 = vld [vmem:[#allocation9 + $0x8] sm:$0xff]
    %v203 = vld [vmem:[#allocation15] sm:$0x1]
    %v205 = vlaneseq
    %v206 = vshrl.u32 %v205, 7
    %v207 = vsub.s32 0, %v206
    %v208 = vrot.slane %v203, %v207
    %vm210 = vcmask 130048
    %v212 = vsel %vm210, %v200, 0
    %214 = vmatprep.subr.mxu0 0.0
    %215 = vmatpush1.msra.mxu0 0.0
    %216 = vmatprep.subr.mxu0 0.0
    %217 = vmatpush1.msra.mxu0 0.0
    %218 = vmatprep.subr.mxu0 0.0
    %219 = vmatpush1.msra.mxu0 0.0
    %220 = vmatprep.subr.mxu0 0.0
    %221 = vmatpush1.msra.mxu0 0.0
    %222 = vmatprep.subr.mxu0 0.0
    %223 = vmatpush1.msra.mxu0 0.0
    %224 = vmatprep.subr.mxu0 0.0
    %225 = vmatpush1.msra.mxu0 0.0
    %226 = vmatprep.subr.mxu0 0.0
    %227 = vmatpush1.msra.mxu0 0.0
    %228 = vmatprep.subr.mxu0 0.0
    %229 = vmatpush1.msra.mxu0 0.0
    %230 = vmatprep.subr.mxu0 0.0
    %231 = vmatpush1.msra.mxu0 0.0
    %232 = vmatprep.subr.mxu0 0.0
    %233 = vmatpush1.msra.mxu0 0.0
    %234 = vmatprep.subr.mxu0 0.0
    %235 = vmatpush1.msra.mxu0 0.0
    %236 = vmatprep.subr.mxu0 0.0
    %237 = vmatpush1.msra.mxu0 0.0
    %238 = vmatprep.subr.mxu0 0.0
    %239 = vmatpush1.msra.mxu0 0.0
    %240 = vmatprep.subr.mxu0 0.0
    %241 = vmatpush1.msra.mxu0 0.0
    %242 = vmatprep.subr.mxu0 0.0
    %243 = vmatpush1.msra.mxu0 %v202
    %244 = vmatprep.subr.mxu0 0.0
    %245 = vmatpush1.msra.mxu0 %v201
    %246 = vmatprep.subr.mxu0 0.0
    %247 = vmatpush2.msra.mxu0 0.0
    %248 = vmatprep.subr.mxu0 0.0
    %249 = vmatpush2.msra.mxu0 0.0
    %250 = vmatprep.subr.mxu0 0.0
    %251 = vmatpush2.msra.mxu0 0.0
    %252 = vmatprep.subr.mxu0 0.0
    %253 = vmatpush2.msra.mxu0 0.0
    %254 = vmatprep.subr.mxu0 0.0
    %255 = vmatpush2.msra.mxu0 0.0
    %256 = vmatprep.subr.mxu0 0.0
    %257 = vmatpush2.msra.mxu0 0.0
    %258 = vmatprep.subr.mxu0 0.0
    %259 = vmatpush2.msra.mxu0 0.0
    %260 = vmatprep.subr.mxu0 0.0
    %261 = vmatpush2.msra.mxu0 0.0
    %262 = vmatprep.subr.mxu0 0.0
    %263 = vmatpush2.msra.mxu0 0.0
    %264 = vmatprep.subr.mxu0 0.0
    %265 = vmatpush2.msra.mxu0 0.0
    %266 = vmatprep.subr.mxu0 0.0
    %267 = vmatpush2.msra.mxu0 0.0
    %268 = vmatprep.subr.mxu0 0.0
    %269 = vmatpush2.msra.mxu0 0.0
    %270 = vmatprep.subr.mxu0 0.0
    %271 = vmatpush2.msra.mxu0 0.0
    %272 = vmatprep.subr.mxu0 0.0
    %273 = vmatpush2.msra.mxu0 0.0
    %274 = vmatprep.subr.mxu0 0.0
    %275 = vmatpush2.msra.mxu0 0.0
    %276 = vmatprep.subr.mxu0 0.0
    %277 = vmatpush2.msra.mxu0 0.0
    %278 = vmatprep.mubr.f32.mxu0 0.0
    %279 = vmatmul.mubr.f32.gmra.mxu0 %v212
    %v280 = vpop.f32.mrf.mxu0
    %v281 = vadd.f32 %v208, %v280
    %v282 = vpop.f32.mrf.mxu0
    %283 = vdwg.mxu0
    %v284 = vld [vmem:[#allocation11] sm:$0xff]
    %v285 = vld [vmem:[#allocation11 + $0x8] sm:$0xff]
    %v286 = vld [vmem:[#allocation17] sm:$0x1]
    %v288 = vlaneseq
    %v289 = vshrl.u32 %v288, 7
    %v290 = vsub.s32 0, %v289
    %v291 = vrot.slane %v286, %v290
    %293 = vmatprep.subr.mxu0 0.0
    %294 = vmatpush1.msra.mxu0 0.0
    %295 = vmatprep.subr.mxu0 0.0
    %296 = vmatpush1.msra.mxu0 0.0
    %297 = vmatprep.subr.mxu0 0.0
    %298 = vmatpush1.msra.mxu0 0.0
    %299 = vmatprep.subr.mxu0 0.0
    %300 = vmatpush1.msra.mxu0 0.0
    %301 = vmatprep.subr.mxu0 0.0
    %302 = vmatpush1.msra.mxu0 0.0
    %303 = vmatprep.subr.mxu0 0.0
    %304 = vmatpush1.msra.mxu0 0.0
    %305 = vmatprep.subr.mxu0 0.0
    %306 = vmatpush1.msra.mxu0 0.0
    %307 = vmatprep.subr.mxu0 0.0
    %308 = vmatpush1.msra.mxu0 0.0
    %309 = vmatprep.subr.mxu0 0.0
    %310 = vmatpush1.msra.mxu0 0.0
    %311 = vmatprep.subr.mxu0 0.0
    %312 = vmatpush1.msra.mxu0 0.0
    %313 = vmatprep.subr.mxu0 0.0
    %314 = vmatpush1.msra.mxu0 0.0
    %315 = vmatprep.subr.mxu0 0.0
    %316 = vmatpush1.msra.mxu0 0.0
    %317 = vmatprep.subr.mxu0 0.0
    %318 = vmatpush1.msra.mxu0 0.0
    %319 = vmatprep.subr.mxu0 0.0
    %320 = vmatpush1.msra.mxu0 0.0
    %321 = vmatprep.subr.mxu0 0.0
    %322 = vmatpush1.msra.mxu0 %v285
    %323 = vmatprep.subr.mxu0 0.0
    %324 = vmatpush1.msra.mxu0 %v284
    %325 = vmatprep.subr.mxu0 0.0
    %326 = vmatpush2.msra.mxu0 0.0
    %327 = vmatprep.subr.mxu0 0.0
    %328 = vmatpush2.msra.mxu0 0.0
    %329 = vmatprep.subr.mxu0 0.0
    %330 = vmatpush2.msra.mxu0 0.0
    %331 = vmatprep.subr.mxu0 0.0
    %332 = vmatpush2.msra.mxu0 0.0
    %333 = vmatprep.subr.mxu0 0.0
    %334 = vmatpush2.msra.mxu0 0.0
    %335 = vmatprep.subr.mxu0 0.0
    %336 = vmatpush2.msra.mxu0 0.0
    %337 = vmatprep.subr.mxu0 0.0
    %338 = vmatpush2.msra.mxu0 0.0
    %339 = vmatprep.subr.mxu0 0.0
    %340 = vmatpush2.msra.mxu0 0.0
    %341 = vmatprep.subr.mxu0 0.0
    %342 = vmatpush2.msra.mxu0 0.0
    %343 = vmatprep.subr.mxu0 0.0
    %344 = vmatpush2.msra.mxu0 0.0
    %345 = vmatprep.subr.mxu0 0.0
    %346 = vmatpush2.msra.mxu0 0.0
    %347 = vmatprep.subr.mxu0 0.0
    %348 = vmatpush2.msra.mxu0 0.0
    %349 = vmatprep.subr.mxu0 0.0
    %350 = vmatpush2.msra.mxu0 0.0
    %351 = vmatprep.subr.mxu0 0.0
    %352 = vmatpush2.msra.mxu0 0.0
    %353 = vmatprep.subr.mxu0 0.0
    %354 = vmatpush2.msra.mxu0 0.0
    %355 = vmatprep.subr.mxu0 0.0
    %356 = vmatpush2.msra.mxu0 0.0
    %357 = vmatprep.mubr.f32.mxu0 0.0
    %358 = vmatmul.mubr.f32.gmra.mxu0 %v212
    %v359 = vpop.f32.mrf.mxu0
    %v360 = vadd.f32 %v291, %v359
    %v361 = vpop.f32.mrf.mxu0
    %362 = vdwg.mxu0
    %v363 = vld [vmem:[#allocation12] sm:$0xff]
    %v364 = vld [vmem:[#allocation12 + $0x8] sm:$0xff]
    %v365 = vld [vmem:[#allocation18] sm:$0x1]
    %v367 = vlaneseq
    %v368 = vshrl.u32 %v367, 7
    %v369 = vsub.s32 0, %v368
    %v370 = vrot.slane %v365, %v369
    %372 = vmatprep.subr.mxu0 0.0
    %373 = vmatpush1.msra.mxu0 0.0
    %374 = vmatprep.subr.mxu0 0.0
    %375 = vmatpush1.msra.mxu0 0.0
    %376 = vmatprep.subr.mxu0 0.0
    %377 = vmatpush1.msra.mxu0 0.0
    %378 = vmatprep.subr.mxu0 0.0
    %379 = vmatpush1.msra.mxu0 0.0
    %380 = vmatprep.subr.mxu0 0.0
    %381 = vmatpush1.msra.mxu0 0.0
    %382 = vmatprep.subr.mxu0 0.0
    %383 = vmatpush1.msra.mxu0 0.0
    %384 = vmatprep.subr.mxu0 0.0
    %385 = vmatpush1.msra.mxu0 0.0
    %386 = vmatprep.subr.mxu0 0.0
    %387 = vmatpush1.msra.mxu0 0.0
    %388 = vmatprep.subr.mxu0 0.0
    %389 = vmatpush1.msra.mxu0 0.0
    %390 = vmatprep.subr.mxu0 0.0
    %391 = vmatpush1.msra.mxu0 0.0
    %392 = vmatprep.subr.mxu0 0.0
    %393 = vmatpush1.msra.mxu0 0.0
    %394 = vmatprep.subr.mxu0 0.0
    %395 = vmatpush1.msra.mxu0 0.0
    %396 = vmatprep.subr.mxu0 0.0
    %397 = vmatpush1.msra.mxu0 0.0
    %398 = vmatprep.subr.mxu0 0.0
    %399 = vmatpush1.msra.mxu0 0.0
    %400 = vmatprep.subr.mxu0 0.0
    %401 = vmatpush1.msra.mxu0 %v364
    %402 = vmatprep.subr.mxu0 0.0
    %403 = vmatpush1.msra.mxu0 %v363
    %404 = vmatprep.subr.mxu0 0.0
    %405 = vmatpush2.msra.mxu0 0.0
    %406 = vmatprep.subr.mxu0 0.0
    %407 = vmatpush2.msra.mxu0 0.0
    %408 = vmatprep.subr.mxu0 0.0
    %409 = vmatpush2.msra.mxu0 0.0
    %410 = vmatprep.subr.mxu0 0.0
    %411 = vmatpush2.msra.mxu0 0.0
    %412 = vmatprep.subr.mxu0 0.0
    %413 = vmatpush2.msra.mxu0 0.0
    %414 = vmatprep.subr.mxu0 0.0
    %415 = vmatpush2.msra.mxu0 0.0
    %416 = vmatprep.subr.mxu0 0.0
    %417 = vmatpush2.msra.mxu0 0.0
    %418 = vmatprep.subr.mxu0 0.0
    %419 = vmatpush2.msra.mxu0 0.0
    %420 = vmatprep.subr.mxu0 0.0
    %421 = vmatpush2.msra.mxu0 0.0
    %422 = vmatprep.subr.mxu0 0.0
    %423 = vmatpush2.msra.mxu0 0.0
    %424 = vmatprep.subr.mxu0 0.0
    %425 = vmatpush2.msra.mxu0 0.0
    %426 = vmatprep.subr.mxu0 0.0
    %427 = vmatpush2.msra.mxu0 0.0
    %428 = vmatprep.subr.mxu0 0.0
    %429 = vmatpush2.msra.mxu0 0.0
    %430 = vmatprep.subr.mxu0 0.0
    %431 = vmatpush2.msra.mxu0 0.0
    %432 = vmatprep.subr.mxu0 0.0
    %433 = vmatpush2.msra.mxu0 0.0
    %434 = vmatprep.subr.mxu0 0.0
    %435 = vmatpush2.msra.mxu0 0.0
    %436 = vmatprep.mubr.f32.mxu0 0.0
    %437 = vmatmul.mubr.f32.gmra.mxu0 %v212
    %v438 = vpop.f32.mrf.mxu0
    %v439 = vadd.f32 %v370, %v438
    %v440 = vpop.f32.mrf.mxu0
    %441 = vdwg.mxu0
    %v442 = vld [vmem:[%s6] sm:$0xff]
    %v443 = vld [vmem:[%s6 + $0x8] sm:$0xff]
    %v444 = vld [vmem:[%s6 + $0x10] sm:$0xff]
    %v445 = vld [vmem:[%s6 + $0x18] sm:$0xff]
    %v446 = vld [vmem:[%s7] sm:$0xff]
    %v447 = vld [vmem:[%s7 + $0x8] sm:$0xff]
    %v448 = vld [vmem:[%s7 + $0x10] sm:$0xff]
    %v449 = vld [vmem:[%s7 + $0x18] sm:$0xff]
    %v450 = vld [vmem:[#allocation14] sm:$0xff]
    %v451 = vld [vmem:[#allocation14 + $0x8] sm:$0xff]
    %v452 = vld [vmem:[#allocation14 + $0x10] sm:$0xff]
    %v453 = vld [vmem:[#allocation14 + $0x18] sm:$0xff]
    %v454 = vld [vmem:[#allocation20] sm:$0x1]
    %v455 = vld [vmem:[#allocation6] sm:$0x1]
    %vm456 = vcmask 261120
    %v458 = vsel %vm456, %v455, 0
    %460 = vmatprep.subr.mxu0 0.0
    %461 = vmatpush1.msra.mxu0 0.0
    %462 = vmatprep.subr.mxu0 0.0
    %463 = vmatpush1.msra.mxu0 0.0
    %464 = vmatprep.subr.mxu0 0.0
    %465 = vmatpush1.msra.mxu0 0.0
    %466 = vmatprep.subr.mxu0 0.0
    %467 = vmatpush1.msra.mxu0 0.0
    %468 = vmatprep.subr.mxu0 0.0
    %469 = vmatpush1.msra.mxu0 0.0
    %470 = vmatprep.subr.mxu0 0.0
    %471 = vmatpush1.msra.mxu0 0.0
    %472 = vmatprep.subr.mxu0 0.0
    %473 = vmatpush1.msra.mxu0 0.0
    %474 = vmatprep.subr.mxu0 0.0
    %475 = vmatpush1.msra.mxu0 0.0
    %476 = vmatprep.subr.mxu0 0.0
    %477 = vmatpush1.msra.mxu0 0.0
    %478 = vmatprep.subr.mxu0 0.0
    %479 = vmatpush1.msra.mxu0 0.0
    %480 = vmatprep.subr.mxu0 0.0
    %481 = vmatpush1.msra.mxu0 0.0
    %482 = vmatprep.subr.mxu0 0.0
    %483 = vmatpush1.msra.mxu0 0.0
    %484 = vmatprep.subr.mxu0 0.0
    %485 = vmatpush1.msra.mxu0 %v445
    %486 = vmatprep.subr.mxu0 0.0
    %487 = vmatpush1.msra.mxu0 %v444
    %488 = vmatprep.subr.mxu0 0.0
    %489 = vmatpush1.msra.mxu0 %v443
    %490 = vmatprep.subr.mxu0 0.0
    %491 = vmatpush1.msra.mxu0 %v442
    %492 = vmatprep.subr.mxu0 0.0
    %493 = vmatpush2.msra.mxu0 0.0
    %494 = vmatprep.subr.mxu0 0.0
    %495 = vmatpush2.msra.mxu0 0.0
    %496 = vmatprep.subr.mxu0 0.0
    %497 = vmatpush2.msra.mxu0 0.0
    %498 = vmatprep.subr.mxu0 0.0
    %499 = vmatpush2.msra.mxu0 0.0
    %500 = vmatprep.subr.mxu0 0.0
    %501 = vmatpush2.msra.mxu0 0.0
    %502 = vmatprep.subr.mxu0 0.0
    %503 = vmatpush2.msra.mxu0 0.0
    %504 = vmatprep.subr.mxu0 0.0
    %505 = vmatpush2.msra.mxu0 0.0
    %506 = vmatprep.subr.mxu0 0.0
    %507 = vmatpush2.msra.mxu0 0.0
    %508 = vmatprep.subr.mxu0 0.0
    %509 = vmatpush2.msra.mxu0 0.0
    %510 = vmatprep.subr.mxu0 0.0
    %511 = vmatpush2.msra.mxu0 0.0
    %512 = vmatprep.subr.mxu0 0.0
    %513 = vmatpush2.msra.mxu0 0.0
    %514 = vmatprep.subr.mxu0 0.0
    %515 = vmatpush2.msra.mxu0 0.0
    %516 = vmatprep.subr.mxu0 0.0
    %517 = vmatpush2.msra.mxu0 0.0
    %518 = vmatprep.subr.mxu0 0.0
    %519 = vmatpush2.msra.mxu0 0.0
    %520 = vmatprep.subr.mxu0 0.0
    %521 = vmatpush2.msra.mxu0 0.0
    %522 = vmatprep.subr.mxu0 0.0
    %523 = vmatpush2.msra.mxu0 0.0
    %524 = vmatprep.mubr.f32.mxu0 0.0
    %525 = vmatmul.mubr.f32.gmra.mxu0 %v458
    %v526 = vpop.f32.mrf.mxu0
    %v527 = vadd.f32 0.0, %v526
    %v528 = vpop.f32.mrf.mxu0
    %529 = vdwg.mxu0
    %530 = vmatprep.subr.mxu0 0.0
    %531 = vmatpush1.msra.mxu0 0.0
    %532 = vmatprep.subr.mxu0 0.0
    %533 = vmatpush1.msra.mxu0 0.0
    %534 = vmatprep.subr.mxu0 0.0
    %535 = vmatpush1.msra.mxu0 0.0
    %536 = vmatprep.subr.mxu0 0.0
    %537 = vmatpush1.msra.mxu0 0.0
    %538 = vmatprep.subr.mxu0 0.0
    %539 = vmatpush1.msra.mxu0 0.0
    %540 = vmatprep.subr.mxu0 0.0
    %541 = vmatpush1.msra.mxu0 0.0
    %542 = vmatprep.subr.mxu0 0.0
    %543 = vmatpush1.msra.mxu0 0.0
    %544 = vmatprep.subr.mxu0 0.0
    %545 = vmatpush1.msra.mxu0 0.0
    %546 = vmatprep.subr.mxu0 0.0
    %547 = vmatpush1.msra.mxu0 0.0
    %548 = vmatprep.subr.mxu0 0.0
    %549 = vmatpush1.msra.mxu0 0.0
    %550 = vmatprep.subr.mxu0 0.0
    %551 = vmatpush1.msra.mxu0 0.0
    %552 = vmatprep.subr.mxu0 0.0
    %553 = vmatpush1.msra.mxu0 0.0
    %554 = vmatprep.subr.mxu0 0.0
    %555 = vmatpush1.msra.mxu0 %v449
    %556 = vmatprep.subr.mxu0 0.0
    %557 = vmatpush1.msra.mxu0 %v448
    %558 = vmatprep.subr.mxu0 0.0
    %559 = vmatpush1.msra.mxu0 %v447
    %560 = vmatprep.subr.mxu0 0.0
    %561 = vmatpush1.msra.mxu0 %v446
    %562 = vmatprep.subr.mxu0 0.0
    %563 = vmatpush2.msra.mxu0 0.0
    %564 = vmatprep.subr.mxu0 0.0
    %565 = vmatpush2.msra.mxu0 0.0
    %566 = vmatprep.subr.mxu0 0.0
    %567 = vmatpush2.msra.mxu0 0.0
    %568 = vmatprep.subr.mxu0 0.0
    %569 = vmatpush2.msra.mxu0 0.0
    %570 = vmatprep.subr.mxu0 0.0
    %571 = vmatpush2.msra.mxu0 0.0
    %572 = vmatprep.subr.mxu0 0.0
    %573 = vmatpush2.msra.mxu0 0.0
    %574 = vmatprep.subr.mxu0 0.0
    %575 = vmatpush2.msra.mxu0 0.0
    %576 = vmatprep.subr.mxu0 0.0
    %577 = vmatpush2.msra.mxu0 0.0
    %578 = vmatprep.subr.mxu0 0.0
    %579 = vmatpush2.msra.mxu0 0.0
    %580 = vmatprep.subr.mxu0 0.0
    %581 = vmatpush2.msra.mxu0 0.0
    %582 = vmatprep.subr.mxu0 0.0
    %583 = vmatpush2.msra.mxu0 0.0
    %584 = vmatprep.subr.mxu0 0.0
    %585 = vmatpush2.msra.mxu0 0.0
    %586 = vmatprep.subr.mxu0 0.0
    %587 = vmatpush2.msra.mxu0 0.0
    %588 = vmatprep.subr.mxu0 0.0
    %589 = vmatpush2.msra.mxu0 0.0
    %590 = vmatprep.subr.mxu0 0.0
    %591 = vmatpush2.msra.mxu0 0.0
    %592 = vmatprep.subr.mxu0 0.0
    %593 = vmatpush2.msra.mxu0 0.0
    %594 = vmatprep.mubr.f32.mxu0 0.0
    %595 = vmatmul.mubr.f32.gmra.mxu0 %v458
    %v596 = vpop.f32.mrf.mxu0
    %v597 = vadd.f32 0.0, %v596
    %v598 = vpop.f32.mrf.mxu0
    %599 = vdwg.mxu0
    %600 = vmatprep.subr.mxu0 0.0
    %601 = vmatpush1.msra.mxu0 0.0
    %602 = vmatprep.subr.mxu0 0.0
    %603 = vmatpush1.msra.mxu0 0.0
    %604 = vmatprep.subr.mxu0 0.0
    %605 = vmatpush1.msra.mxu0 0.0
    %606 = vmatprep.subr.mxu0 0.0
    %607 = vmatpush1.msra.mxu0 0.0
    %608 = vmatprep.subr.mxu0 0.0
    %609 = vmatpush1.msra.mxu0 0.0
    %610 = vmatprep.subr.mxu0 0.0
    %611 = vmatpush1.msra.mxu0 0.0
    %612 = vmatprep.subr.mxu0 0.0
    %613 = vmatpush1.msra.mxu0 0.0
    %614 = vmatprep.subr.mxu0 0.0
    %615 = vmatpush1.msra.mxu0 0.0
    %616 = vmatprep.subr.mxu0 0.0
    %617 = vmatpush1.msra.mxu0 0.0
    %618 = vmatprep.subr.mxu0 0.0
    %619 = vmatpush1.msra.mxu0 0.0
    %620 = vmatprep.subr.mxu0 0.0
    %621 = vmatpush1.msra.mxu0 0.0
    %622 = vmatprep.subr.mxu0 0.0
    %623 = vmatpush1.msra.mxu0 0.0
    %624 = vmatprep.subr.mxu0 0.0
    %625 = vmatpush1.msra.mxu0 %v453
    %626 = vmatprep.subr.mxu0 0.0
    %627 = vmatpush1.msra.mxu0 %v452
    %628 = vmatprep.subr.mxu0 0.0
    %629 = vmatpush1.msra.mxu0 %v451
    %630 = vmatprep.subr.mxu0 0.0
    %631 = vmatpush1.msra.mxu0 %v450
    %632 = vmatprep.subr.mxu0 0.0
    %633 = vmatpush2.msra.mxu0 0.0
    %634 = vmatprep.subr.mxu0 0.0
    %635 = vmatpush2.msra.mxu0 0.0
    %636 = vmatprep.subr.mxu0 0.0
    %637 = vmatpush2.msra.mxu0 0.0
    %638 = vmatprep.subr.mxu0 0.0
    %639 = vmatpush2.msra.mxu0 0.0
    %640 = vmatprep.subr.mxu0 0.0
    %641 = vmatpush2.msra.mxu0 0.0
    %642 = vmatprep.subr.mxu0 0.0
    %643 = vmatpush2.msra.mxu0 0.0
    %644 = vmatprep.subr.mxu0 0.0
    %645 = vmatpush2.msra.mxu0 0.0
    %646 = vmatprep.subr.mxu0 0.0
    %647 = vmatpush2.msra.mxu0 0.0
    %648 = vmatprep.subr.mxu0 0.0
    %649 = vmatpush2.msra.mxu0 0.0
    %650 = vmatprep.subr.mxu0 0.0
    %651 = vmatpush2.msra.mxu0 0.0
    %652 = vmatprep.subr.mxu0 0.0
    %653 = vmatpush2.msra.mxu0 0.0
    %654 = vmatprep.subr.mxu0 0.0
    %655 = vmatpush2.msra.mxu0 0.0
    %656 = vmatprep.subr.mxu0 0.0
    %657 = vmatpush2.msra.mxu0 0.0
    %658 = vmatprep.subr.mxu0 0.0
    %659 = vmatpush2.msra.mxu0 0.0
    %660 = vmatprep.subr.mxu0 0.0
    %661 = vmatpush2.msra.mxu0 0.0
    %662 = vmatprep.subr.mxu0 0.0
    %663 = vmatpush2.msra.mxu0 0.0
    %664 = vmatprep.mubr.f32.mxu0 0.0
    %665 = vmatmul.mubr.f32.gmra.mxu0 %v458
    %v666 = vpop.f32.mrf.mxu0
    %v667 = vadd.f32 %v454, %v666
    %v668 = vpop.f32.mrf.mxu0
    %669 = vdwg.mxu0
    %v670 = vadd.f32 %v281, %v527
    %v671 = vxor.u32 %v670, 2147483648
    %v672 = vmul.f32 %v671, 1.442695
    %v673 = vpow.pop %v672
    %v674 = vadd.f32 %v673, 1.0
    %v675 = vrcp.pop %v674
    %v676 = vmul.f32 1.0, %v675
    %v677 = vadd.f32 %v360, %v597
    %v678 = vxor.u32 %v677, 2147483648
    %v679 = vmul.f32 %v678, 1.442695
    %v680 = vpow.pop %v679
    %v681 = vadd.f32 %v680, 1.0
    %v682 = vrcp.pop %v681
    %v683 = vmul.f32 1.0, %v682
    %v684 = vmul.f32 %v676, %v667
    %v685 = vadd.f32 %v439, %v684
    %v686 = vtanh.pop %v685
    %v687 = vsub.f32 1.0, %v683
    %v688 = vmul.f32 %v687, %v686
    %v689 = vmul.f32 %v683, %v455
    %v690 = vadd.f32 %v688, %v689
    %vm691 = vcmask 253952
    %692 = vst.msk [vmem:[#allocation2] sm:$0x1] %vm691, %v690
    %v694 = vsel %vm456, %v690, 0
    %696 = vmatprep.subr.mxu0 0.0
    %697 = vmatpush1.msra.mxu0 0.0
    %698 = vmatprep.subr.mxu0 0.0
    %699 = vmatpush1.msra.mxu0 0.0
    %700 = vmatprep.subr.mxu0 0.0
    %701 = vmatpush1.msra.mxu0 0.0
    %702 = vmatprep.subr.mxu0 0.0
    %703 = vmatpush1.msra.mxu0 0.0
    %704 = vmatprep.subr.mxu0 0.0
    %705 = vmatpush1.msra.mxu0 0.0
    %706 = vmatprep.subr.mxu0 0.0
    %707 = vmatpush1.msra.mxu0 0.0
    %708 = vmatprep.subr.mxu0 0.0
    %709 = vmatpush1.msra.mxu0 0.0
    %710 = vmatprep.subr.mxu0 0.0
    %711 = vmatpush1.msra.mxu0 0.0
    %712 = vmatprep.subr.mxu0 0.0
    %713 = vmatpush1.msra.mxu0 0.0
    %714 = vmatprep.subr.mxu0 0.0
    %715 = vmatpush1.msra.mxu0 0.0
    %716 = vmatprep.subr.mxu0 0.0
    %717 = vmatpush1.msra.mxu0 0.0
    %718 = vmatprep.subr.mxu0 0.0
    %719 = vmatpush1.msra.mxu0 0.0
    %720 = vmatprep.subr.mxu0 0.0
    %721 = vmatpush1.msra.mxu0 %v445
    %722 = vmatprep.subr.mxu0 0.0
    %723 = vmatpush1.msra.mxu0 %v444
    %724 = vmatprep.subr.mxu0 0.0
    %725 = vmatpush1.msra.mxu0 %v443
    %726 = vmatprep.subr.mxu0 0.0
    %727 = vmatpush1.msra.mxu0 %v442
    %728 = vmatprep.subr.mxu0 0.0
    %729 = vmatpush2.msra.mxu0 0.0
    %730 = vmatprep.subr.mxu0 0.0
    %731 = vmatpush2.msra.mxu0 0.0
    %732 = vmatprep.subr.mxu0 0.0
    %733 = vmatpush2.msra.mxu0 0.0
    %734 = vmatprep.subr.mxu0 0.0
    %735 = vmatpush2.msra.mxu0 0.0
    %736 = vmatprep.subr.mxu0 0.0
    %737 = vmatpush2.msra.mxu0 0.0
    %738 = vmatprep.subr.mxu0 0.0
    %739 = vmatpush2.msra.mxu0 0.0
    %740 = vmatprep.subr.mxu0 0.0
    %741 = vmatpush2.msra.mxu0 0.0
    %742 = vmatprep.subr.mxu0 0.0
    %743 = vmatpush2.msra.mxu0 0.0
    %744 = vmatprep.subr.mxu0 0.0
    %745 = vmatpush2.msra.mxu0 0.0
    %746 = vmatprep.subr.mxu0 0.0
    %747 = vmatpush2.msra.mxu0 0.0
    %748 = vmatprep.subr.mxu0 0.0
    %749 = vmatpush2.msra.mxu0 0.0
    %750 = vmatprep.subr.mxu0 0.0
    %751 = vmatpush2.msra.mxu0 0.0
    %752 = vmatprep.subr.mxu0 0.0
    %753 = vmatpush2.msra.mxu0 0.0
    %754 = vmatprep.subr.mxu0 0.0
    %755 = vmatpush2.msra.mxu0 0.0
    %756 = vmatprep.subr.mxu0 0.0
    %757 = vmatpush2.msra.mxu0 0.0
    %758 = vmatprep.subr.mxu0 0.0
    %759 = vmatpush2.msra.mxu0 0.0
    %760 = vmatprep.mubr.f32.mxu0 0.0
    %761 = vmatmul.mubr.f32.gmra.mxu0 %v694
    %v762 = vpop.f32.mrf.mxu0
    %v763 = vadd.f32 0.0, %v762
    %v764 = vpop.f32.mrf.mxu0
    %765 = vdwg.mxu0
    %766 = vmatprep.subr.mxu0 0.0
    %767 = vmatpush1.msra.mxu0 0.0
    %768 = vmatprep.subr.mxu0 0.0
    %769 = vmatpush1.msra.mxu0 0.0
    %770 = vmatprep.subr.mxu0 0.0
    %771 = vmatpush1.msra.mxu0 0.0
    %772 = vmatprep.subr.mxu0 0.0
    %773 = vmatpush1.msra.mxu0 0.0
    %774 = vmatprep.subr.mxu0 0.0
    %775 = vmatpush1.msra.mxu0 0.0
    %776 = vmatprep.subr.mxu0 0.0
    %777 = vmatpush1.msra.mxu0 0.0
    %778 = vmatprep.subr.mxu0 0.0
    %779 = vmatpush1.msra.mxu0 0.0
    %780 = vmatprep.subr.mxu0 0.0
    %781 = vmatpush1.msra.mxu0 0.0
    %782 = vmatprep.subr.mxu0 0.0
    %783 = vmatpush1.msra.mxu0 0.0
    %784 = vmatprep.subr.mxu0 0.0
    %785 = vmatpush1.msra.mxu0 0.0
    %786 = vmatprep.subr.mxu0 0.0
    %787 = vmatpush1.msra.mxu0 0.0
    %788 = vmatprep.subr.mxu0 0.0
    %789 = vmatpush1.msra.mxu0 0.0
    %790 = vmatprep.subr.mxu0 0.0
    %791 = vmatpush1.msra.mxu0 %v449
    %792 = vmatprep.subr.mxu0 0.0
    %793 = vmatpush1.msra.mxu0 %v448
    %794 = vmatprep.subr.mxu0 0.0
    %795 = vmatpush1.msra.mxu0 %v447
    %796 = vmatprep.subr.mxu0 0.0
    %797 = vmatpush1.msra.mxu0 %v446
    %798 = vmatprep.subr.mxu0 0.0
    %799 = vmatpush2.msra.mxu0 0.0
    %800 = vmatprep.subr.mxu0 0.0
    %801 = vmatpush2.msra.mxu0 0.0
    %802 = vmatprep.subr.mxu0 0.0
    %803 = vmatpush2.msra.mxu0 0.0
    %804 = vmatprep.subr.mxu0 0.0
    %805 = vmatpush2.msra.mxu0 0.0
    %806 = vmatprep.subr.mxu0 0.0
    %807 = vmatpush2.msra.mxu0 0.0
    %808 = vmatprep.subr.mxu0 0.0
    %809 = vmatpush2.msra.mxu0 0.0
    %810 = vmatprep.subr.mxu0 0.0
    %811 = vmatpush2.msra.mxu0 0.0
    %812 = vmatprep.subr.mxu0 0.0
    %813 = vmatpush2.msra.mxu0 0.0
    %814 = vmatprep.subr.mxu0 0.0
    %815 = vmatpush2.msra.mxu0 0.0
    %816 = vmatprep.subr.mxu0 0.0
    %817 = vmatpush2.msra.mxu0 0.0
    %818 = vmatprep.subr.mxu0 0.0
    %819 = vmatpush2.msra.mxu0 0.0
    %820 = vmatprep.subr.mxu0 0.0
    %821 = vmatpush2.msra.mxu0 0.0
    %822 = vmatprep.subr.mxu0 0.0
    %823 = vmatpush2.msra.mxu0 0.0
    %824 = vmatprep.subr.mxu0 0.0
    %825 = vmatpush2.msra.mxu0 0.0
    %826 = vmatprep.subr.mxu0 0.0
    %827 = vmatpush2.msra.mxu0 0.0
    %828 = vmatprep.subr.mxu0 0.0
    %829 = vmatpush2.msra.mxu0 0.0
    %830 = vmatprep.mubr.f32.mxu0 0.0
    %831 = vmatmul.mubr.f32.gmra.mxu0 %v694
    %v832 = vpop.f32.mrf.mxu0
    %v833 = vadd.f32 0.0, %v832
    %v834 = vpop.f32.mrf.mxu0
    %835 = vdwg.mxu0
    %836 = vmatprep.subr.mxu0 0.0
    %837 = vmatpush1.msra.mxu0 0.0
    %838 = vmatprep.subr.mxu0 0.0
    %839 = vmatpush1.msra.mxu0 0.0
    %840 = vmatprep.subr.mxu0 0.0
    %841 = vmatpush1.msra.mxu0 0.0
    %842 = vmatprep.subr.mxu0 0.0
    %843 = vmatpush1.msra.mxu0 0.0
    %844 = vmatprep.subr.mxu0 0.0
    %845 = vmatpush1.msra.mxu0 0.0
    %846 = vmatprep.subr.mxu0 0.0
    %847 = vmatpush1.msra.mxu0 0.0
    %848 = vmatprep.subr.mxu0 0.0
    %849 = vmatpush1.msra.mxu0 0.0
    %850 = vmatprep.subr.mxu0 0.0
    %851 = vmatpush1.msra.mxu0 0.0
    %852 = vmatprep.subr.mxu0 0.0
    %853 = vmatpush1.msra.mxu0 0.0
    %854 = vmatprep.subr.mxu0 0.0
    %855 = vmatpush1.msra.mxu0 0.0
    %856 = vmatprep.subr.mxu0 0.0
    %857 = vmatpush1.msra.mxu0 0.0
    %858 = vmatprep.subr.mxu0 0.0
    %859 = vmatpush1.msra.mxu0 0.0
    %860 = vmatprep.subr.mxu0 0.0
    %861 = vmatpush1.msra.mxu0 %v453
    %862 = vmatprep.subr.mxu0 0.0
    %863 = vmatpush1.msra.mxu0 %v452
    %864 = vmatprep.subr.mxu0 0.0
    %865 = vmatpush1.msra.mxu0 %v451
    %866 = vmatprep.subr.mxu0 0.0
    %867 = vmatpush1.msra.mxu0 %v450
    %868 = vmatprep.subr.mxu0 0.0
    %869 = vmatpush2.msra.mxu0 0.0
    %870 = vmatprep.subr.mxu0 0.0
    %871 = vmatpush2.msra.mxu0 0.0
    %872 = vmatprep.subr.mxu0 0.0
    %873 = vmatpush2.msra.mxu0 0.0
    %874 = vmatprep.subr.mxu0 0.0
    %875 = vmatpush2.msra.mxu0 0.0
    %876 = vmatprep.subr.mxu0 0.0
    %877 = vmatpush2.msra.mxu0 0.0
    %878 = vmatprep.subr.mxu0 0.0
    %879 = vmatpush2.msra.mxu0 0.0
    %880 = vmatprep.subr.mxu0 0.0
    %881 = vmatpush2.msra.mxu0 0.0
    %882 = vmatprep.subr.mxu0 0.0
    %883 = vmatpush2.msra.mxu0 0.0
    %884 = vmatprep.subr.mxu0 0.0
    %885 = vmatpush2.msra.mxu0 0.0
    %886 = vmatprep.subr.mxu0 0.0
    %887 = vmatpush2.msra.mxu0 0.0
    %888 = vmatprep.subr.mxu0 0.0
    %889 = vmatpush2.msra.mxu0 0.0
    %890 = vmatprep.subr.mxu0 0.0
    %891 = vmatpush2.msra.mxu0 0.0
    %892 = vmatprep.subr.mxu0 0.0
    %893 = vmatpush2.msra.mxu0 0.0
    %894 = vmatprep.subr.mxu0 0.0
    %895 = vmatpush2.msra.mxu0 0.0
    %896 = vmatprep.subr.mxu0 0.0
    %897 = vmatpush2.msra.mxu0 0.0
    %898 = vmatprep.subr.mxu0 0.0
    %899 = vmatpush2.msra.mxu0 0.0
    %900 = vmatprep.mubr.f32.mxu0 0.0
    %901 = vmatmul.mubr.f32.gmra.mxu0 %v694
    %v902 = vpop.f32.mrf.mxu0
    %v903 = vadd.f32 %v454, %v902
    %v904 = vpop.f32.mrf.mxu0
    %905 = vdwg.mxu0
    %v907 = vrot.slane %v763, 7
    %v909 = vadd.f32 %v281, %v907
    %v910 = vxor.u32 %v909, 2147483648
    %v911 = vmul.f32 %v910, 1.442695
    %v912 = vpow.pop %v911
    %v913 = vadd.f32 %v912, 1.0
    %v914 = vrcp.pop %v913
    %v915 = vmul.f32 1.0, %v914
    %v917 = vrot.slane %v833, 7
    %v919 = vadd.f32 %v360, %v917
    %v920 = vxor.u32 %v919, 2147483648
    %v921 = vmul.f32 %v920, 1.442695
    %v922 = vpow.pop %v921
    %v923 = vadd.f32 %v922, 1.0
    %v924 = vrcp.pop %v923
    %v925 = vmul.f32 1.0, %v924
    %v927 = vrot.slane %v903, 7
    %v929 = vmul.f32 %v915, %v927
    %v930 = vadd.f32 %v439, %v929
    %v931 = vtanh.pop %v930
    %v932 = vsub.f32 1.0, %v925
    %v933 = vmul.f32 %v932, %v931
    %v934 = vrot.slane %v690, 7
    %v936 = vmul.f32 %v925, %v934
    %v937 = vadd.f32 %v933, %v936
    %vm938 = vcmask 254977
    %939 = vst.msk [vmem:[#allocation2] sm:$0x2] %vm938, %v937
    %v941 = vrot.slane %v937, 1
    %v942 = vsel %vm456, %v941, 0
    %944 = vmatprep.subr.mxu0 0.0
    %945 = vmatpush1.msra.mxu0 0.0
    %946 = vmatprep.subr.mxu0 0.0
    %947 = vmatpush1.msra.mxu0 0.0
    %948 = vmatprep.subr.mxu0 0.0
    %949 = vmatpush1.msra.mxu0 0.0
    %950 = vmatprep.subr.mxu0 0.0
    %951 = vmatpush1.msra.mxu0 0.0
    %952 = vmatprep.subr.mxu0 0.0
    %953 = vmatpush1.msra.mxu0 0.0
    %954 = vmatprep.subr.mxu0 0.0
    %955 = vmatpush1.msra.mxu0 0.0
    %956 = vmatprep.subr.mxu0 0.0
    %957 = vmatpush1.msra.mxu0 0.0
    %958 = vmatprep.subr.mxu0 0.0
    %959 = vmatpush1.msra.mxu0 0.0
    %960 = vmatprep.subr.mxu0 0.0
    %961 = vmatpush1.msra.mxu0 0.0
    %962 = vmatprep.subr.mxu0 0.0
    %963 = vmatpush1.msra.mxu0 0.0
    %964 = vmatprep.subr.mxu0 0.0
    %965 = vmatpush1.msra.mxu0 0.0
    %966 = vmatprep.subr.mxu0 0.0
    %967 = vmatpush1.msra.mxu0 0.0
    %968 = vmatprep.subr.mxu0 0.0
    %969 = vmatpush1.msra.mxu0 %v445
    %970 = vmatprep.subr.mxu0 0.0
    %971 = vmatpush1.msra.mxu0 %v444
    %972 = vmatprep.subr.mxu0 0.0
    %973 = vmatpush1.msra.mxu0 %v443
    %974 = vmatprep.subr.mxu0 0.0
    %975 = vmatpush1.msra.mxu0 %v442
    %976 = vmatprep.subr.mxu0 0.0
    %977 = vmatpush2.msra.mxu0 0.0
    %978 = vmatprep.subr.mxu0 0.0
    %979 = vmatpush2.msra.mxu0 0.0
    %980 = vmatprep.subr.mxu0 0.0
    %981 = vmatpush2.msra.mxu0 0.0
    %982 = vmatprep.subr.mxu0 0.0
    %983 = vmatpush2.msra.mxu0 0.0
    %984 = vmatprep.subr.mxu0 0.0
    %985 = vmatpush2.msra.mxu0 0.0
    %986 = vmatprep.subr.mxu0 0.0
    %987 = vmatpush2.msra.mxu0 0.0
    %988 = vmatprep.subr.mxu0 0.0
    %989 = vmatpush2.msra.mxu0 0.0
    %990 = vmatprep.subr.mxu0 0.0
    %991 = vmatpush2.msra.mxu0 0.0
    %992 = vmatprep.subr.mxu0 0.0
    %993 = vmatpush2.msra.mxu0 0.0
    %994 = vmatprep.subr.mxu0 0.0
    %995 = vmatpush2.msra.mxu0 0.0
    %996 = vmatprep.subr.mxu0 0.0
    %997 = vmatpush2.msra.mxu0 0.0
    %998 = vmatprep.subr.mxu0 0.0
    %999 = vmatpush2.msra.mxu0 0.0
    %1000 = vmatprep.subr.mxu0 0.0
    %1001 = vmatpush2.msra.mxu0 0.0
    %1002 = vmatprep.subr.mxu0 0.0
    %1003 = vmatpush2.msra.mxu0 0.0
    %1004 = vmatprep.subr.mxu0 0.0
    %1005 = vmatpush2.msra.mxu0 0.0
    %1006 = vmatprep.subr.mxu0 0.0
    %1007 = vmatpush2.msra.mxu0 0.0
    %1008 = vmatprep.mubr.f32.mxu0 0.0
    %1009 = vmatmul.mubr.f32.gmra.mxu0 %v942
    %v1010 = vpop.f32.mrf.mxu0
    %v1011 = vadd.f32 0.0, %v1010
    %v1012 = vpop.f32.mrf.mxu0
    %1013 = vdwg.mxu0
    %1014 = vmatprep.subr.mxu0 0.0
    %1015 = vmatpush1.msra.mxu0 0.0
    %1016 = vmatprep.subr.mxu0 0.0
    %1017 = vmatpush1.msra.mxu0 0.0
    %1018 = vmatprep.subr.mxu0 0.0
    %1019 = vmatpush1.msra.mxu0 0.0
    %1020 = vmatprep.subr.mxu0 0.0
    %1021 = vmatpush1.msra.mxu0 0.0
    %1022 = vmatprep.subr.mxu0 0.0
    %1023 = vmatpush1.msra.mxu0 0.0
    %1024 = vmatprep.subr.mxu0 0.0
    %1025 = vmatpush1.msra.mxu0 0.0
    %1026 = vmatprep.subr.mxu0 0.0
    %1027 = vmatpush1.msra.mxu0 0.0
    %1028 = vmatprep.subr.mxu0 0.0
    %1029 = vmatpush1.msra.mxu0 0.0
    %1030 = vmatprep.subr.mxu0 0.0
    %1031 = vmatpush1.msra.mxu0 0.0
    %1032 = vmatprep.subr.mxu0 0.0
    %1033 = vmatpush1.msra.mxu0 0.0
    %1034 = vmatprep.subr.mxu0 0.0
    %1035 = vmatpush1.msra.mxu0 0.0
    %1036 = vmatprep.subr.mxu0 0.0
    %1037 = vmatpush1.msra.mxu0 0.0
    %1038 = vmatprep.subr.mxu0 0.0
    %1039 = vmatpush1.msra.mxu0 %v449
    %1040 = vmatprep.subr.mxu0 0.0
    %1041 = vmatpush1.msra.mxu0 %v448
    %1042 = vmatprep.subr.mxu0 0.0
    %1043 = vmatpush1.msra.mxu0 %v447
    %1044 = vmatprep.subr.mxu0 0.0
    %1045 = vmatpush1.msra.mxu0 %v446
    %1046 = vmatprep.subr.mxu0 0.0
    %1047 = vmatpush2.msra.mxu0 0.0
    %1048 = vmatprep.subr.mxu0 0.0
    %1049 = vmatpush2.msra.mxu0 0.0
    %1050 = vmatprep.subr.mxu0 0.0
    %1051 = vmatpush2.msra.mxu0 0.0
    %1052 = vmatprep.subr.mxu0 0.0
    %1053 = vmatpush2.msra.mxu0 0.0
    %1054 = vmatprep.subr.mxu0 0.0
    %1055 = vmatpush2.msra.mxu0 0.0
    %1056 = vmatprep.subr.mxu0 0.0
    %1057 = vmatpush2.msra.mxu0 0.0
    %1058 = vmatprep.subr.mxu0 0.0
    %1059 = vmatpush2.msra.mxu0 0.0
    %1060 = vmatprep.subr.mxu0 0.0
    %1061 = vmatpush2.msra.mxu0 0.0
    %1062 = vmatprep.subr.mxu0 0.0
    %1063 = vmatpush2.msra.mxu0 0.0
    %1064 = vmatprep.subr.mxu0 0.0
    %1065 = vmatpush2.msra.mxu0 0.0
    %1066 = vmatprep.subr.mxu0 0.0
    %1067 = vmatpush2.msra.mxu0 0.0
    %1068 = vmatprep.subr.mxu0 0.0
    %1069 = vmatpush2.msra.mxu0 0.0
    %1070 = vmatprep.subr.mxu0 0.0
    %1071 = vmatpush2.msra.mxu0 0.0
    %1072 = vmatprep.subr.mxu0 0.0
    %1073 = vmatpush2.msra.mxu0 0.0
    %1074 = vmatprep.subr.mxu0 0.0
    %1075 = vmatpush2.msra.mxu0 0.0
    %1076 = vmatprep.subr.mxu0 0.0
    %1077 = vmatpush2.msra.mxu0 0.0
    %1078 = vmatprep.mubr.f32.mxu0 0.0
    %1079 = vmatmul.mubr.f32.gmra.mxu0 %v942
    %v1080 = vpop.f32.mrf.mxu0
    %v1081 = vadd.f32 0.0, %v1080
    %v1082 = vpop.f32.mrf.mxu0
    %1083 = vdwg.mxu0
    %1084 = vmatprep.subr.mxu0 0.0
    %1085 = vmatpush1.msra.mxu0 0.0
    %1086 = vmatprep.subr.mxu0 0.0
    %1087 = vmatpush1.msra.mxu0 0.0
    %1088 = vmatprep.subr.mxu0 0.0
    %1089 = vmatpush1.msra.mxu0 0.0
    %1090 = vmatprep.subr.mxu0 0.0
    %1091 = vmatpush1.msra.mxu0 0.0
    %1092 = vmatprep.subr.mxu0 0.0
    %1093 = vmatpush1.msra.mxu0 0.0
    %1094 = vmatprep.subr.mxu0 0.0
    %1095 = vmatpush1.msra.mxu0 0.0
    %1096 = vmatprep.subr.mxu0 0.0
    %1097 = vmatpush1.msra.mxu0 0.0
    %1098 = vmatprep.subr.mxu0 0.0
    %1099 = vmatpush1.msra.mxu0 0.0
    %1100 = vmatprep.subr.mxu0 0.0
    %1101 = vmatpush1.msra.mxu0 0.0
    %1102 = vmatprep.subr.mxu0 0.0
    %1103 = vmatpush1.msra.mxu0 0.0
    %1104 = vmatprep.subr.mxu0 0.0
    %1105 = vmatpush1.msra.mxu0 0.0
    %1106 = vmatprep.subr.mxu0 0.0
    %1107 = vmatpush1.msra.mxu0 0.0
    %1108 = vmatprep.subr.mxu0 0.0
    %1109 = vmatpush1.msra.mxu0 %v453
    %1110 = vmatprep.subr.mxu0 0.0
    %1111 = vmatpush1.msra.mxu0 %v452
    %1112 = vmatprep.subr.mxu0 0.0
    %1113 = vmatpush1.msra.mxu0 %v451
    %1114 = vmatprep.subr.mxu0 0.0
    %1115 = vmatpush1.msra.mxu0 %v450
    %1116 = vmatprep.subr.mxu0 0.0
    %1117 = vmatpush2.msra.mxu0 0.0
    %1118 = vmatprep.subr.mxu0 0.0
    %1119 = vmatpush2.msra.mxu0 0.0
    %1120 = vmatprep.subr.mxu0 0.0
    %1121 = vmatpush2.msra.mxu0 0.0
    %1122 = vmatprep.subr.mxu0 0.0
    %1123 = vmatpush2.msra.mxu0 0.0
    %1124 = vmatprep.subr.mxu0 0.0
    %1125 = vmatpush2.msra.mxu0 0.0
    %1126 = vmatprep.subr.mxu0 0.0
    %1127 = vmatpush2.msra.mxu0 0.0
    %1128 = vmatprep.subr.mxu0 0.0
    %1129 = vmatpush2.msra.mxu0 0.0
    %1130 = vmatprep.subr.mxu0 0.0
    %1131 = vmatpush2.msra.mxu0 0.0
    %1132 = vmatprep.subr.mxu0 0.0
    %1133 = vmatpush2.msra.mxu0 0.0
    %1134 = vmatprep.subr.mxu0 0.0
    %1135 = vmatpush2.msra.mxu0 0.0
    %1136 = vmatprep.subr.mxu0 0.0
    %1137 = vmatpush2.msra.mxu0 0.0
    %1138 = vmatprep.subr.mxu0 0.0
    %1139 = vmatpush2.msra.mxu0 0.0
    %1140 = vmatprep.subr.mxu0 0.0
    %1141 = vmatpush2.msra.mxu0 0.0
    %1142 = vmatprep.subr.mxu0 0.0
    %1143 = vmatpush2.msra.mxu0 0.0
    %1144 = vmatprep.subr.mxu0 0.0
    %1145 = vmatpush2.msra.mxu0 0.0
    %1146 = vmatprep.subr.mxu0 0.0
    %1147 = vmatpush2.msra.mxu0 0.0
    %1148 = vmatprep.mubr.f32.mxu0 0.0
    %1149 = vmatmul.mubr.f32.gmra.mxu0 %v942
    %v1150 = vpop.f32.mrf.mxu0
    %v1151 = vadd.f32 %v454, %v1150
    %v1152 = vpop.f32.mrf.mxu0
    %1153 = vdwg.mxu0
    %v1155 = vrot.slane %v1011, 6
    %v1157 = vadd.f32 %v281, %v1155
    %v1158 = vxor.u32 %v1157, 2147483648
    %v1159 = vmul.f32 %v1158, 1.442695
    %v1160 = vpow.pop %v1159
    %v1161 = vadd.f32 %v1160, 1.0
    %v1162 = vrcp.pop %v1161
    %v1163 = vmul.f32 1.0, %v1162
    %v1165 = vrot.slane %v1081, 6
    %v1167 = vadd.f32 %v360, %v1165
    %v1168 = vxor.u32 %v1167, 2147483648
    %v1169 = vmul.f32 %v1168, 1.442695
    %v1170 = vpow.pop %v1169
    %v1171 = vadd.f32 %v1170, 1.0
    %v1172 = vrcp.pop %v1171
    %v1173 = vmul.f32 1.0, %v1172
    %v1175 = vrot.slane %v1151, 6
    %v1177 = vmul.f32 %v1163, %v1175
    %v1178 = vadd.f32 %v439, %v1177
    %v1179 = vtanh.pop %v1178
    %v1180 = vsub.f32 1.0, %v1173
    %v1181 = vmul.f32 %v1180, %v1179
    %v1182 = vrot.slane %v937, 7
    %v1184 = vmul.f32 %v1173, %v1182
    %v1185 = vadd.f32 %v1181, %v1184
    %vm1186 = vcmask 256002
    %1187 = vst.msk [vmem:[#allocation2] sm:$0x4] %vm1186, %v1185
    %v1189 = vrot.slane %v1185, 2
    %v1190 = vsel %vm456, %v1189, 0
    %1192 = vmatprep.subr.mxu0 0.0
    %1193 = vmatpush1.msra.mxu0 0.0
    %1194 = vmatprep.subr.mxu0 0.0
    %1195 = vmatpush1.msra.mxu0 0.0
    %1196 = vmatprep.subr.mxu0 0.0
    %1197 = vmatpush1.msra.mxu0 0.0
    %1198 = vmatprep.subr.mxu0 0.0
    %1199 = vmatpush1.msra.mxu0 0.0
    %1200 = vmatprep.subr.mxu0 0.0
    %1201 = vmatpush1.msra.mxu0 0.0
    %1202 = vmatprep.subr.mxu0 0.0
    %1203 = vmatpush1.msra.mxu0 0.0
    %1204 = vmatprep.subr.mxu0 0.0
    %1205 = vmatpush1.msra.mxu0 0.0
    %1206 = vmatprep.subr.mxu0 0.0
    %1207 = vmatpush1.msra.mxu0 0.0
    %1208 = vmatprep.subr.mxu0 0.0
    %1209 = vmatpush1.msra.mxu0 0.0
    %1210 = vmatprep.subr.mxu0 0.0
    %1211 = vmatpush1.msra.mxu0 0.0
    %1212 = vmatprep.subr.mxu0 0.0
    %1213 = vmatpush1.msra.mxu0 0.0
    %1214 = vmatprep.subr.mxu0 0.0
    %1215 = vmatpush1.msra.mxu0 0.0
    %1216 = vmatprep.subr.mxu0 0.0
    %1217 = vmatpush1.msra.mxu0 %v445
    %1218 = vmatprep.subr.mxu0 0.0
    %1219 = vmatpush1.msra.mxu0 %v444
    %1220 = vmatprep.subr.mxu0 0.0
    %1221 = vmatpush1.msra.mxu0 %v443
    %1222 = vmatprep.subr.mxu0 0.0
    %1223 = vmatpush1.msra.mxu0 %v442
    %1224 = vmatprep.subr.mxu0 0.0
    %1225 = vmatpush2.msra.mxu0 0.0
    %1226 = vmatprep.subr.mxu0 0.0
    %1227 = vmatpush2.msra.mxu0 0.0
    %1228 = vmatprep.subr.mxu0 0.0
    %1229 = vmatpush2.msra.mxu0 0.0
    %1230 = vmatprep.subr.mxu0 0.0
    %1231 = vmatpush2.msra.mxu0 0.0
    %1232 = vmatprep.subr.mxu0 0.0
    %1233 = vmatpush2.msra.mxu0 0.0
    %1234 = vmatprep.subr.mxu0 0.0
    %1235 = vmatpush2.msra.mxu0 0.0
    %1236 = vmatprep.subr.mxu0 0.0
    %1237 = vmatpush2.msra.mxu0 0.0
    %1238 = vmatprep.subr.mxu0 0.0
    %1239 = vmatpush2.msra.mxu0 0.0
    %1240 = vmatprep.subr.mxu0 0.0
    %1241 = vmatpush2.msra.mxu0 0.0
    %1242 = vmatprep.subr.mxu0 0.0
    %1243 = vmatpush2.msra.mxu0 0.0
    %1244 = vmatprep.subr.mxu0 0.0
    %1245 = vmatpush2.msra.mxu0 0.0
    %1246 = vmatprep.subr.mxu0 0.0
    %1247 = vmatpush2.msra.mxu0 0.0
    %1248 = vmatprep.subr.mxu0 0.0
    %1249 = vmatpush2.msra.mxu0 0.0
    %1250 = vmatprep.subr.mxu0 0.0
    %1251 = vmatpush2.msra.mxu0 0.0
    %1252 = vmatprep.subr.mxu0 0.0
    %1253 = vmatpush2.msra.mxu0 0.0
    %1254 = vmatprep.subr.mxu0 0.0
    %1255 = vmatpush2.msra.mxu0 0.0
    %1256 = vmatprep.mubr.f32.mxu0 0.0
    %1257 = vmatmul.mubr.f32.gmra.mxu0 %v1190
    %v1258 = vpop.f32.mrf.mxu0
    %v1259 = vadd.f32 0.0, %v1258
    %v1260 = vpop.f32.mrf.mxu0
    %1261 = vdwg.mxu0
    %1262 = vmatprep.subr.mxu0 0.0
    %1263 = vmatpush1.msra.mxu0 0.0
    %1264 = vmatprep.subr.mxu0 0.0
    %1265 = vmatpush1.msra.mxu0 0.0
    %1266 = vmatprep.subr.mxu0 0.0
    %1267 = vmatpush1.msra.mxu0 0.0
    %1268 = vmatprep.subr.mxu0 0.0
    %1269 = vmatpush1.msra.mxu0 0.0
    %1270 = vmatprep.subr.mxu0 0.0
    %1271 = vmatpush1.msra.mxu0 0.0
    %1272 = vmatprep.subr.mxu0 0.0
    %1273 = vmatpush1.msra.mxu0 0.0
    %1274 = vmatprep.subr.mxu0 0.0
    %1275 = vmatpush1.msra.mxu0 0.0
    %1276 = vmatprep.subr.mxu0 0.0
    %1277 = vmatpush1.msra.mxu0 0.0
    %1278 = vmatprep.subr.mxu0 0.0
    %1279 = vmatpush1.msra.mxu0 0.0
    %1280 = vmatprep.subr.mxu0 0.0
    %1281 = vmatpush1.msra.mxu0 0.0
    %1282 = vmatprep.subr.mxu0 0.0
    %1283 = vmatpush1.msra.mxu0 0.0
    %1284 = vmatprep.subr.mxu0 0.0
    %1285 = vmatpush1.msra.mxu0 0.0
    %1286 = vmatprep.subr.mxu0 0.0
    %1287 = vmatpush1.msra.mxu0 %v449
    %1288 = vmatprep.subr.mxu0 0.0
    %1289 = vmatpush1.msra.mxu0 %v448
    %1290 = vmatprep.subr.mxu0 0.0
    %1291 = vmatpush1.msra.mxu0 %v447
    %1292 = vmatprep.subr.mxu0 0.0
    %1293 = vmatpush1.msra.mxu0 %v446
    %1294 = vmatprep.subr.mxu0 0.0
    %1295 = vmatpush2.msra.mxu0 0.0
    %1296 = vmatprep.subr.mxu0 0.0
    %1297 = vmatpush2.msra.mxu0 0.0
    %1298 = vmatprep.subr.mxu0 0.0
    %1299 = vmatpush2.msra.mxu0 0.0
    %1300 = vmatprep.subr.mxu0 0.0
    %1301 = vmatpush2.msra.mxu0 0.0
    %1302 = vmatprep.subr.mxu0 0.0
    %1303 = vmatpush2.msra.mxu0 0.0
    %1304 = vmatprep.subr.mxu0 0.0
    %1305 = vmatpush2.msra.mxu0 0.0
    %1306 = vmatprep.subr.mxu0 0.0
    %1307 = vmatpush2.msra.mxu0 0.0
    %1308 = vmatprep.subr.mxu0 0.0
    %1309 = vmatpush2.msra.mxu0 0.0
    %1310 = vmatprep.subr.mxu0 0.0
    %1311 = vmatpush2.msra.mxu0 0.0
    %1312 = vmatprep.subr.mxu0 0.0
    %1313 = vmatpush2.msra.mxu0 0.0
    %1314 = vmatprep.subr.mxu0 0.0
    %1315 = vmatpush2.msra.mxu0 0.0
    %1316 = vmatprep.subr.mxu0 0.0
    %1317 = vmatpush2.msra.mxu0 0.0
    %1318 = vmatprep.subr.mxu0 0.0
    %1319 = vmatpush2.msra.mxu0 0.0
    %1320 = vmatprep.subr.mxu0 0.0
    %1321 = vmatpush2.msra.mxu0 0.0
    %1322 = vmatprep.subr.mxu0 0.0
    %1323 = vmatpush2.msra.mxu0 0.0
    %1324 = vmatprep.subr.mxu0 0.0
    %1325 = vmatpush2.msra.mxu0 0.0
    %1326 = vmatprep.mubr.f32.mxu0 0.0
    %1327 = vmatmul.mubr.f32.gmra.mxu0 %v1190
    %v1328 = vpop.f32.mrf.mxu0
    %v1329 = vadd.f32 0.0, %v1328
    %v1330 = vpop.f32.mrf.mxu0
    %1331 = vdwg.mxu0
    %1332 = vmatprep.subr.mxu0 0.0
    %1333 = vmatpush1.msra.mxu0 0.0
    %1334 = vmatprep.subr.mxu0 0.0
    %1335 = vmatpush1.msra.mxu0 0.0
    %1336 = vmatprep.subr.mxu0 0.0
    %1337 = vmatpush1.msra.mxu0 0.0
    %1338 = vmatprep.subr.mxu0 0.0
    %1339 = vmatpush1.msra.mxu0 0.0
    %1340 = vmatprep.subr.mxu0 0.0
    %1341 = vmatpush1.msra.mxu0 0.0
    %1342 = vmatprep.subr.mxu0 0.0
    %1343 = vmatpush1.msra.mxu0 0.0
    %1344 = vmatprep.subr.mxu0 0.0
    %1345 = vmatpush1.msra.mxu0 0.0
    %1346 = vmatprep.subr.mxu0 0.0
    %1347 = vmatpush1.msra.mxu0 0.0
    %1348 = vmatprep.subr.mxu0 0.0
    %1349 = vmatpush1.msra.mxu0 0.0
    %1350 = vmatprep.subr.mxu0 0.0
    %1351 = vmatpush1.msra.mxu0 0.0
    %1352 = vmatprep.subr.mxu0 0.0
    %1353 = vmatpush1.msra.mxu0 0.0
    %1354 = vmatprep.subr.mxu0 0.0
    %1355 = vmatpush1.msra.mxu0 0.0
    %1356 = vmatprep.subr.mxu0 0.0
    %1357 = vmatpush1.msra.mxu0 %v453
    %1358 = vmatprep.subr.mxu0 0.0
    %1359 = vmatpush1.msra.mxu0 %v452
    %1360 = vmatprep.subr.mxu0 0.0
    %1361 = vmatpush1.msra.mxu0 %v451
    %1362 = vmatprep.subr.mxu0 0.0
    %1363 = vmatpush1.msra.mxu0 %v450
    %1364 = vmatprep.subr.mxu0 0.0
    %1365 = vmatpush2.msra.mxu0 0.0
    %1366 = vmatprep.subr.mxu0 0.0
    %1367 = vmatpush2.msra.mxu0 0.0
    %1368 = vmatprep.subr.mxu0 0.0
    %1369 = vmatpush2.msra.mxu0 0.0
    %1370 = vmatprep.subr.mxu0 0.0
    %1371 = vmatpush2.msra.mxu0 0.0
    %1372 = vmatprep.subr.mxu0 0.0
    %1373 = vmatpush2.msra.mxu0 0.0
    %1374 = vmatprep.subr.mxu0 0.0
    %1375 = vmatpush2.msra.mxu0 0.0
    %1376 = vmatprep.subr.mxu0 0.0
    %1377 = vmatpush2.msra.mxu0 0.0
    %1378 = vmatprep.subr.mxu0 0.0
    %1379 = vmatpush2.msra.mxu0 0.0
    %1380 = vmatprep.subr.mxu0 0.0
    %1381 = vmatpush2.msra.mxu0 0.0
    %1382 = vmatprep.subr.mxu0 0.0
    %1383 = vmatpush2.msra.mxu0 0.0
    %1384 = vmatprep.subr.mxu0 0.0
    %1385 = vmatpush2.msra.mxu0 0.0
    %1386 = vmatprep.subr.mxu0 0.0
    %1387 = vmatpush2.msra.mxu0 0.0
    %1388 = vmatprep.subr.mxu0 0.0
    %1389 = vmatpush2.msra.mxu0 0.0
    %1390 = vmatprep.subr.mxu0 0.0
    %1391 = vmatpush2.msra.mxu0 0.0
    %1392 = vmatprep.subr.mxu0 0.0
    %1393 = vmatpush2.msra.mxu0 0.0
    %1394 = vmatprep.subr.mxu0 0.0
    %1395 = vmatpush2.msra.mxu0 0.0
    %1396 = vmatprep.mubr.f32.mxu0 0.0
    %1397 = vmatmul.mubr.f32.gmra.mxu0 %v1190
    %v1398 = vpop.f32.mrf.mxu0
    %v1399 = vadd.f32 %v454, %v1398
    %v1400 = vpop.f32.mrf.mxu0
    %1401 = vdwg.mxu0
    %v1403 = vrot.slane %v1259, 5
    %v1405 = vadd.f32 %v281, %v1403
    %v1406 = vxor.u32 %v1405, 2147483648
    %v1407 = vmul.f32 %v1406, 1.442695
    %v1408 = vpow.pop %v1407
    %v1409 = vadd.f32 %v1408, 1.0
    %v1410 = vrcp.pop %v1409
    %v1411 = vmul.f32 1.0, %v1410
    %v1413 = vrot.slane %v1329, 5
    %v1415 = vadd.f32 %v360, %v1413
    %v1416 = vxor.u32 %v1415, 2147483648
    %v1417 = vmul.f32 %v1416, 1.442695
    %v1418 = vpow.pop %v1417
    %v1419 = vadd.f32 %v1418, 1.0
    %v1420 = vrcp.pop %v1419
    %v1421 = vmul.f32 1.0, %v1420
    %v1423 = vrot.slane %v1399, 5
    %v1425 = vmul.f32 %v1411, %v1423
    %v1426 = vadd.f32 %v439, %v1425
    %v1427 = vtanh.pop %v1426
    %v1428 = vsub.f32 1.0, %v1421
    %v1429 = vmul.f32 %v1428, %v1427
    %v1430 = vrot.slane %v1185, 7
    %v1432 = vmul.f32 %v1421, %v1430
    %v1433 = vadd.f32 %v1429, %v1432
    %vm1434 = vcmask 257027
    %1435 = vst.msk [vmem:[#allocation2] sm:$0x8] %vm1434, %v1433
    %v1437 = vrot.slane %v1433, 3
    %v1438 = vsel %vm456, %v1437, 0
    %1440 = vmatprep.subr.mxu0 0.0
    %1441 = vmatpush1.msra.mxu0 0.0
    %1442 = vmatprep.subr.mxu0 0.0
    %1443 = vmatpush1.msra.mxu0 0.0
    %1444 = vmatprep.subr.mxu0 0.0
    %1445 = vmatpush1.msra.mxu0 0.0
    %1446 = vmatprep.subr.mxu0 0.0
    %1447 = vmatpush1.msra.mxu0 0.0
    %1448 = vmatprep.subr.mxu0 0.0
    %1449 = vmatpush1.msra.mxu0 0.0
    %1450 = vmatprep.subr.mxu0 0.0
    %1451 = vmatpush1.msra.mxu0 0.0
    %1452 = vmatprep.subr.mxu0 0.0
    %1453 = vmatpush1.msra.mxu0 0.0
    %1454 = vmatprep.subr.mxu0 0.0
    %1455 = vmatpush1.msra.mxu0 0.0
    %1456 = vmatprep.subr.mxu0 0.0
    %1457 = vmatpush1.msra.mxu0 0.0
    %1458 = vmatprep.subr.mxu0 0.0
    %1459 = vmatpush1.msra.mxu0 0.0
    %1460 = vmatprep.subr.mxu0 0.0
    %1461 = vmatpush1.msra.mxu0 0.0
    %1462 = vmatprep.subr.mxu0 0.0
    %1463 = vmatpush1.msra.mxu0 0.0
    %1464 = vmatprep.subr.mxu0 0.0
    %1465 = vmatpush1.msra.mxu0 %v445
    %1466 = vmatprep.subr.mxu0 0.0
    %1467 = vmatpush1.msra.mxu0 %v444
    %1468 = vmatprep.subr.mxu0 0.0
    %1469 = vmatpush1.msra.mxu0 %v443
    %1470 = vmatprep.subr.mxu0 0.0
    %1471 = vmatpush1.msra.mxu0 %v442
    %1472 = vmatprep.subr.mxu0 0.0
    %1473 = vmatpush2.msra.mxu0 0.0
    %1474 = vmatprep.subr.mxu0 0.0
    %1475 = vmatpush2.msra.mxu0 0.0
    %1476 = vmatprep.subr.mxu0 0.0
    %1477 = vmatpush2.msra.mxu0 0.0
    %1478 = vmatprep.subr.mxu0 0.0
    %1479 = vmatpush2.msra.mxu0 0.0
    %1480 = vmatprep.subr.mxu0 0.0
    %1481 = vmatpush2.msra.mxu0 0.0
    %1482 = vmatprep.subr.mxu0 0.0
    %1483 = vmatpush2.msra.mxu0 0.0
    %1484 = vmatprep.subr.mxu0 0.0
    %1485 = vmatpush2.msra.mxu0 0.0
    %1486 = vmatprep.subr.mxu0 0.0
    %1487 = vmatpush2.msra.mxu0 0.0
    %1488 = vmatprep.subr.mxu0 0.0
    %1489 = vmatpush2.msra.mxu0 0.0
    %1490 = vmatprep.subr.mxu0 0.0
    %1491 = vmatpush2.msra.mxu0 0.0
    %1492 = vmatprep.subr.mxu0 0.0
    %1493 = vmatpush2.msra.mxu0 0.0
    %1494 = vmatprep.subr.mxu0 0.0
    %1495 = vmatpush2.msra.mxu0 0.0
    %1496 = vmatprep.subr.mxu0 0.0
    %1497 = vmatpush2.msra.mxu0 0.0
    %1498 = vmatprep.subr.mxu0 0.0
    %1499 = vmatpush2.msra.mxu0 0.0
    %1500 = vmatprep.subr.mxu0 0.0
    %1501 = vmatpush2.msra.mxu0 0.0
    %1502 = vmatprep.subr.mxu0 0.0
    %1503 = vmatpush2.msra.mxu0 0.0
    %1504 = vmatprep.mubr.f32.mxu0 0.0
    %1505 = vmatmul.mubr.f32.gmra.mxu0 %v1438
    %v1506 = vpop.f32.mrf.mxu0
    %v1507 = vadd.f32 0.0, %v1506
    %v1508 = vpop.f32.mrf.mxu0
    %1509 = vdwg.mxu0
    %1510 = vmatprep.subr.mxu0 0.0
    %1511 = vmatpush1.msra.mxu0 0.0
    %1512 = vmatprep.subr.mxu0 0.0
    %1513 = vmatpush1.msra.mxu0 0.0
    %1514 = vmatprep.subr.mxu0 0.0
    %1515 = vmatpush1.msra.mxu0 0.0
    %1516 = vmatprep.subr.mxu0 0.0
    %1517 = vmatpush1.msra.mxu0 0.0
    %1518 = vmatprep.subr.mxu0 0.0
    %1519 = vmatpush1.msra.mxu0 0.0
    %1520 = vmatprep.subr.mxu0 0.0
    %1521 = vmatpush1.msra.mxu0 0.0
    %1522 = vmatprep.subr.mxu0 0.0
    %1523 = vmatpush1.msra.mxu0 0.0
    %1524 = vmatprep.subr.mxu0 0.0
    %1525 = vmatpush1.msra.mxu0 0.0
    %1526 = vmatprep.subr.mxu0 0.0
    %1527 = vmatpush1.msra.mxu0 0.0
    %1528 = vmatprep.subr.mxu0 0.0
    %1529 = vmatpush1.msra.mxu0 0.0
    %1530 = vmatprep.subr.mxu0 0.0
    %1531 = vmatpush1.msra.mxu0 0.0
    %1532 = vmatprep.subr.mxu0 0.0
    %1533 = vmatpush1.msra.mxu0 0.0
    %1534 = vmatprep.subr.mxu0 0.0
    %1535 = vmatpush1.msra.mxu0 %v449
    %1536 = vmatprep.subr.mxu0 0.0
    %1537 = vmatpush1.msra.mxu0 %v448
    %1538 = vmatprep.subr.mxu0 0.0
    %1539 = vmatpush1.msra.mxu0 %v447
    %1540 = vmatprep.subr.mxu0 0.0
    %1541 = vmatpush1.msra.mxu0 %v446
    %1542 = vmatprep.subr.mxu0 0.0
    %1543 = vmatpush2.msra.mxu0 0.0
    %1544 = vmatprep.subr.mxu0 0.0
    %1545 = vmatpush2.msra.mxu0 0.0
    %1546 = vmatprep.subr.mxu0 0.0
    %1547 = vmatpush2.msra.mxu0 0.0
    %1548 = vmatprep.subr.mxu0 0.0
    %1549 = vmatpush2.msra.mxu0 0.0
    %1550 = vmatprep.subr.mxu0 0.0
    %1551 = vmatpush2.msra.mxu0 0.0
    %1552 = vmatprep.subr.mxu0 0.0
    %1553 = vmatpush2.msra.mxu0 0.0
    %1554 = vmatprep.subr.mxu0 0.0
    %1555 = vmatpush2.msra.mxu0 0.0
    %1556 = vmatprep.subr.mxu0 0.0
    %1557 = vmatpush2.msra.mxu0 0.0
    %1558 = vmatprep.subr.mxu0 0.0
    %1559 = vmatpush2.msra.mxu0 0.0
    %1560 = vmatprep.subr.mxu0 0.0
    %1561 = vmatpush2.msra.mxu0 0.0
    %1562 = vmatprep.subr.mxu0 0.0
    %1563 = vmatpush2.msra.mxu0 0.0
    %1564 = vmatprep.subr.mxu0 0.0
    %1565 = vmatpush2.msra.mxu0 0.0
    %1566 = vmatprep.subr.mxu0 0.0
    %1567 = vmatpush2.msra.mxu0 0.0
    %1568 = vmatprep.subr.mxu0 0.0
    %1569 = vmatpush2.msra.mxu0 0.0
    %1570 = vmatprep.subr.mxu0 0.0
    %1571 = vmatpush2.msra.mxu0 0.0
    %1572 = vmatprep.subr.mxu0 0.0
    %1573 = vmatpush2.msra.mxu0 0.0
    %1574 = vmatprep.mubr.f32.mxu0 0.0
    %1575 = vmatmul.mubr.f32.gmra.mxu0 %v1438
    %v1576 = vpop.f32.mrf.mxu0
    %v1577 = vadd.f32 0.0, %v1576
    %v1578 = vpop.f32.mrf.mxu0
    %1579 = vdwg.mxu0
    %1580 = vmatprep.subr.mxu0 0.0
    %1581 = vmatpush1.msra.mxu0 0.0
    %1582 = vmatprep.subr.mxu0 0.0
    %1583 = vmatpush1.msra.mxu0 0.0
    %1584 = vmatprep.subr.mxu0 0.0
    %1585 = vmatpush1.msra.mxu0 0.0
    %1586 = vmatprep.subr.mxu0 0.0
    %1587 = vmatpush1.msra.mxu0 0.0
    %1588 = vmatprep.subr.mxu0 0.0
    %1589 = vmatpush1.msra.mxu0 0.0
    %1590 = vmatprep.subr.mxu0 0.0
    %1591 = vmatpush1.msra.mxu0 0.0
    %1592 = vmatprep.subr.mxu0 0.0
    %1593 = vmatpush1.msra.mxu0 0.0
    %1594 = vmatprep.subr.mxu0 0.0
    %1595 = vmatpush1.msra.mxu0 0.0
    %1596 = vmatprep.subr.mxu0 0.0
    %1597 = vmatpush1.msra.mxu0 0.0
    %1598 = vmatprep.subr.mxu0 0.0
    %1599 = vmatpush1.msra.mxu0 0.0
    %1600 = vmatprep.subr.mxu0 0.0
    %1601 = vmatpush1.msra.mxu0 0.0
    %1602 = vmatprep.subr.mxu0 0.0
    %1603 = vmatpush1.msra.mxu0 0.0
    %1604 = vmatprep.subr.mxu0 0.0
    %1605 = vmatpush1.msra.mxu0 %v453
    %1606 = vmatprep.subr.mxu0 0.0
    %1607 = vmatpush1.msra.mxu0 %v452
    %1608 = vmatprep.subr.mxu0 0.0
    %1609 = vmatpush1.msra.mxu0 %v451
    %1610 = vmatprep.subr.mxu0 0.0
    %1611 = vmatpush1.msra.mxu0 %v450
    %1612 = vmatprep.subr.mxu0 0.0
    %1613 = vmatpush2.msra.mxu0 0.0
    %1614 = vmatprep.subr.mxu0 0.0
    %1615 = vmatpush2.msra.mxu0 0.0
    %1616 = vmatprep.subr.mxu0 0.0
    %1617 = vmatpush2.msra.mxu0 0.0
    %1618 = vmatprep.subr.mxu0 0.0
    %1619 = vmatpush2.msra.mxu0 0.0
    %1620 = vmatprep.subr.mxu0 0.0
    %1621 = vmatpush2.msra.mxu0 0.0
    %1622 = vmatprep.subr.mxu0 0.0
    %1623 = vmatpush2.msra.mxu0 0.0
    %1624 = vmatprep.subr.mxu0 0.0
    %1625 = vmatpush2.msra.mxu0 0.0
    %1626 = vmatprep.subr.mxu0 0.0
    %1627 = vmatpush2.msra.mxu0 0.0
    %1628 = vmatprep.subr.mxu0 0.0
    %1629 = vmatpush2.msra.mxu0 0.0
    %1630 = vmatprep.subr.mxu0 0.0
    %1631 = vmatpush2.msra.mxu0 0.0
    %1632 = vmatprep.subr.mxu0 0.0
    %1633 = vmatpush2.msra.mxu0 0.0
    %1634 = vmatprep.subr.mxu0 0.0
    %1635 = vmatpush2.msra.mxu0 0.0
    %1636 = vmatprep.subr.mxu0 0.0
    %1637 = vmatpush2.msra.mxu0 0.0
    %1638 = vmatprep.subr.mxu0 0.0
    %1639 = vmatpush2.msra.mxu0 0.0
    %1640 = vmatprep.subr.mxu0 0.0
    %1641 = vmatpush2.msra.mxu0 0.0
    %1642 = vmatprep.subr.mxu0 0.0
    %1643 = vmatpush2.msra.mxu0 0.0
    %1644 = vmatprep.mubr.f32.mxu0 0.0
    %1645 = vmatmul.mubr.f32.gmra.mxu0 %v1438
    %v1646 = vpop.f32.mrf.mxu0
    %v1647 = vadd.f32 %v454, %v1646
    %v1648 = vpop.f32.mrf.mxu0
    %1649 = vdwg.mxu0
    %v1651 = vrot.slane %v1507, 4
    %v1653 = vadd.f32 %v281, %v1651
    %v1654 = vxor.u32 %v1653, 2147483648
    %v1655 = vmul.f32 %v1654, 1.442695
    %v1656 = vpow.pop %v1655
    %v1657 = vadd.f32 %v1656, 1.0
    %v1658 = vrcp.pop %v1657
    %v1659 = vmul.f32 1.0, %v1658
    %v1661 = vrot.slane %v1577, 4
    %v1663 = vadd.f32 %v360, %v1661
    %v1664 = vxor.u32 %v1663, 2147483648
    %v1665 = vmul.f32 %v1664, 1.442695
    %v1666 = vpow.pop %v1665
    %v1667 = vadd.f32 %v1666, 1.0
    %v1668 = vrcp.pop %v1667
    %v1669 = vmul.f32 1.0, %v1668
    %v1671 = vrot.slane %v1647, 4
    %v1673 = vmul.f32 %v1659, %v1671
    %v1674 = vadd.f32 %v439, %v1673
    %v1675 = vtanh.pop %v1674
    %v1676 = vsub.f32 1.0, %v1669
    %v1677 = vmul.f32 %v1676, %v1675
    %v1678 = vrot.slane %v1433, 7
    %v1680 = vmul.f32 %v1669, %v1678
    %v1681 = vadd.f32 %v1677, %v1680
    %vm1682 = vcmask 258052
    %1683 = vst.msk [vmem:[#allocation2] sm:$0x10] %vm1682, %v1681
    %v1685 = vrot.slane %v1681, 4
    %v1686 = vsel %vm456, %v1685, 0
    %1688 = vmatprep.subr.mxu0 0.0
    %1689 = vmatpush1.msra.mxu0 0.0
    %1690 = vmatprep.subr.mxu0 0.0
    %1691 = vmatpush1.msra.mxu0 0.0
    %1692 = vmatprep.subr.mxu0 0.0
    %1693 = vmatpush1.msra.mxu0 0.0
    %1694 = vmatprep.subr.mxu0 0.0
    %1695 = vmatpush1.msra.mxu0 0.0
    %1696 = vmatprep.subr.mxu0 0.0
    %1697 = vmatpush1.msra.mxu0 0.0
    %1698 = vmatprep.subr.mxu0 0.0
    %1699 = vmatpush1.msra.mxu0 0.0
    %1700 = vmatprep.subr.mxu0 0.0
    %1701 = vmatpush1.msra.mxu0 0.0
    %1702 = vmatprep.subr.mxu0 0.0
    %1703 = vmatpush1.msra.mxu0 0.0
    %1704 = vmatprep.subr.mxu0 0.0
    %1705 = vmatpush1.msra.mxu0 0.0
    %1706 = vmatprep.subr.mxu0 0.0
    %1707 = vmatpush1.msra.mxu0 0.0
    %1708 = vmatprep.subr.mxu0 0.0
    %1709 = vmatpush1.msra.mxu0 0.0
    %1710 = vmatprep.subr.mxu0 0.0
    %1711 = vmatpush1.msra.mxu0 0.0
    %1712 = vmatprep.subr.mxu0 0.0
    %1713 = vmatpush1.msra.mxu0 %v445
    %1714 = vmatprep.subr.mxu0 0.0
    %1715 = vmatpush1.msra.mxu0 %v444
    %1716 = vmatprep.subr.mxu0 0.0
    %1717 = vmatpush1.msra.mxu0 %v443
    %1718 = vmatprep.subr.mxu0 0.0
    %1719 = vmatpush1.msra.mxu0 %v442
    %1720 = vmatprep.subr.mxu0 0.0
    %1721 = vmatpush2.msra.mxu0 0.0
    %1722 = vmatprep.subr.mxu0 0.0
    %1723 = vmatpush2.msra.mxu0 0.0
    %1724 = vmatprep.subr.mxu0 0.0
    %1725 = vmatpush2.msra.mxu0 0.0
    %1726 = vmatprep.subr.mxu0 0.0
    %1727 = vmatpush2.msra.mxu0 0.0
    %1728 = vmatprep.subr.mxu0 0.0
    %1729 = vmatpush2.msra.mxu0 0.0
    %1730 = vmatprep.subr.mxu0 0.0
    %1731 = vmatpush2.msra.mxu0 0.0
    %1732 = vmatprep.subr.mxu0 0.0
    %1733 = vmatpush2.msra.mxu0 0.0
    %1734 = vmatprep.subr.mxu0 0.0
    %1735 = vmatpush2.msra.mxu0 0.0
    %1736 = vmatprep.subr.mxu0 0.0
    %1737 = vmatpush2.msra.mxu0 0.0
    %1738 = vmatprep.subr.mxu0 0.0
    %1739 = vmatpush2.msra.mxu0 0.0
    %1740 = vmatprep.subr.mxu0 0.0
    %1741 = vmatpush2.msra.mxu0 0.0
    %1742 = vmatprep.subr.mxu0 0.0
    %1743 = vmatpush2.msra.mxu0 0.0
    %1744 = vmatprep.subr.mxu0 0.0
    %1745 = vmatpush2.msra.mxu0 0.0
    %1746 = vmatprep.subr.mxu0 0.0
    %1747 = vmatpush2.msra.mxu0 0.0
    %1748 = vmatprep.subr.mxu0 0.0
    %1749 = vmatpush2.msra.mxu0 0.0
    %1750 = vmatprep.subr.mxu0 0.0
    %1751 = vmatpush2.msra.mxu0 0.0
    %1752 = vmatprep.mubr.f32.mxu0 0.0
    %1753 = vmatmul.mubr.f32.gmra.mxu0 %v1686
    %v1754 = vpop.f32.mrf.mxu0
    %v1755 = vadd.f32 0.0, %v1754
    %v1756 = vpop.f32.mrf.mxu0
    %1757 = vdwg.mxu0
    %1758 = vmatprep.subr.mxu0 0.0
    %1759 = vmatpush1.msra.mxu0 0.0
    %1760 = vmatprep.subr.mxu0 0.0
    %1761 = vmatpush1.msra.mxu0 0.0
    %1762 = vmatprep.subr.mxu0 0.0
    %1763 = vmatpush1.msra.mxu0 0.0
    %1764 = vmatprep.subr.mxu0 0.0
    %1765 = vmatpush1.msra.mxu0 0.0
    %1766 = vmatprep.subr.mxu0 0.0
    %1767 = vmatpush1.msra.mxu0 0.0
    %1768 = vmatprep.subr.mxu0 0.0
    %1769 = vmatpush1.msra.mxu0 0.0
    %1770 = vmatprep.subr.mxu0 0.0
    %1771 = vmatpush1.msra.mxu0 0.0
    %1772 = vmatprep.subr.mxu0 0.0
    %1773 = vmatpush1.msra.mxu0 0.0
    %1774 = vmatprep.subr.mxu0 0.0
    %1775 = vmatpush1.msra.mxu0 0.0
    %1776 = vmatprep.subr.mxu0 0.0
    %1777 = vmatpush1.msra.mxu0 0.0
    %1778 = vmatprep.subr.mxu0 0.0
    %1779 = vmatpush1.msra.mxu0 0.0
    %1780 = vmatprep.subr.mxu0 0.0
    %1781 = vmatpush1.msra.mxu0 0.0
    %1782 = vmatprep.subr.mxu0 0.0
    %1783 = vmatpush1.msra.mxu0 %v449
    %1784 = vmatprep.subr.mxu0 0.0
    %1785 = vmatpush1.msra.mxu0 %v448
    %1786 = vmatprep.subr.mxu0 0.0
    %1787 = vmatpush1.msra.mxu0 %v447
    %1788 = vmatprep.subr.mxu0 0.0
    %1789 = vmatpush1.msra.mxu0 %v446
    %1790 = vmatprep.subr.mxu0 0.0
    %1791 = vmatpush2.msra.mxu0 0.0
    %1792 = vmatprep.subr.mxu0 0.0
    %1793 = vmatpush2.msra.mxu0 0.0
    %1794 = vmatprep.subr.mxu0 0.0
    %1795 = vmatpush2.msra.mxu0 0.0
    %1796 = vmatprep.subr.mxu0 0.0
    %1797 = vmatpush2.msra.mxu0 0.0
    %1798 = vmatprep.subr.mxu0 0.0
    %1799 = vmatpush2.msra.mxu0 0.0
    %1800 = vmatprep.subr.mxu0 0.0
    %1801 = vmatpush2.msra.mxu0 0.0
    %1802 = vmatprep.subr.mxu0 0.0
    %1803 = vmatpush2.msra.mxu0 0.0
    %1804 = vmatprep.subr.mxu0 0.0
    %1805 = vmatpush2.msra.mxu0 0.0
    %1806 = vmatprep.subr.mxu0 0.0
    %1807 = vmatpush2.msra.mxu0 0.0
    %1808 = vmatprep.subr.mxu0 0.0
    %1809 = vmatpush2.msra.mxu0 0.0
    %1810 = vmatprep.subr.mxu0 0.0
    %1811 = vmatpush2.msra.mxu0 0.0
    %1812 = vmatprep.subr.mxu0 0.0
    %1813 = vmatpush2.msra.mxu0 0.0
    %1814 = vmatprep.subr.mxu0 0.0
    %1815 = vmatpush2.msra.mxu0 0.0
    %1816 = vmatprep.subr.mxu0 0.0
    %1817 = vmatpush2.msra.mxu0 0.0
    %1818 = vmatprep.subr.mxu0 0.0
    %1819 = vmatpush2.msra.mxu0 0.0
    %1820 = vmatprep.subr.mxu0 0.0
    %1821 = vmatpush2.msra.mxu0 0.0
    %1822 = vmatprep.mubr.f32.mxu0 0.0
    %1823 = vmatmul.mubr.f32.gmra.mxu0 %v1686
    %v1824 = vpop.f32.mrf.mxu0
    %v1825 = vadd.f32 0.0, %v1824
    %v1826 = vpop.f32.mrf.mxu0
    %1827 = vdwg.mxu0
    %1828 = vmatprep.subr.mxu0 0.0
    %1829 = vmatpush1.msra.mxu0 0.0
    %1830 = vmatprep.subr.mxu0 0.0
    %1831 = vmatpush1.msra.mxu0 0.0
    %1832 = vmatprep.subr.mxu0 0.0
    %1833 = vmatpush1.msra.mxu0 0.0
    %1834 = vmatprep.subr.mxu0 0.0
    %1835 = vmatpush1.msra.mxu0 0.0
    %1836 = vmatprep.subr.mxu0 0.0
    %1837 = vmatpush1.msra.mxu0 0.0
    %1838 = vmatprep.subr.mxu0 0.0
    %1839 = vmatpush1.msra.mxu0 0.0
    %1840 = vmatprep.subr.mxu0 0.0
    %1841 = vmatpush1.msra.mxu0 0.0
    %1842 = vmatprep.subr.mxu0 0.0
    %1843 = vmatpush1.msra.mxu0 0.0
    %1844 = vmatprep.subr.mxu0 0.0
    %1845 = vmatpush1.msra.mxu0 0.0
    %1846 = vmatprep.subr.mxu0 0.0
    %1847 = vmatpush1.msra.mxu0 0.0
    %1848 = vmatprep.subr.mxu0 0.0
    %1849 = vmatpush1.msra.mxu0 0.0
    %1850 = vmatprep.subr.mxu0 0.0
    %1851 = vmatpush1.msra.mxu0 0.0
    %1852 = vmatprep.subr.mxu0 0.0
    %1853 = vmatpush1.msra.mxu0 %v453
    %1854 = vmatprep.subr.mxu0 0.0
    %1855 = vmatpush1.msra.mxu0 %v452
    %1856 = vmatprep.subr.mxu0 0.0
    %1857 = vmatpush1.msra.mxu0 %v451
    %1858 = vmatprep.subr.mxu0 0.0
    %1859 = vmatpush1.msra.mxu0 %v450
    %1860 = vmatprep.subr.mxu0 0.0
    %1861 = vmatpush2.msra.mxu0 0.0
    %1862 = vmatprep.subr.mxu0 0.0
    %1863 = vmatpush2.msra.mxu0 0.0
    %1864 = vmatprep.subr.mxu0 0.0
    %1865 = vmatpush2.msra.mxu0 0.0
    %1866 = vmatprep.subr.mxu0 0.0
    %1867 = vmatpush2.msra.mxu0 0.0
    %1868 = vmatprep.subr.mxu0 0.0
    %1869 = vmatpush2.msra.mxu0 0.0
    %1870 = vmatprep.subr.mxu0 0.0
    %1871 = vmatpush2.msra.mxu0 0.0
    %1872 = vmatprep.subr.mxu0 0.0
    %1873 = vmatpush2.msra.mxu0 0.0
    %1874 = vmatprep.subr.mxu0 0.0
    %1875 = vmatpush2.msra.mxu0 0.0
    %1876 = vmatprep.subr.mxu0 0.0
    %1877 = vmatpush2.msra.mxu0 0.0
    %1878 = vmatprep.subr.mxu0 0.0
    %1879 = vmatpush2.msra.mxu0 0.0
    %1880 = vmatprep.subr.mxu0 0.0
    %1881 = vmatpush2.msra.mxu0 0.0
    %1882 = vmatprep.subr.mxu0 0.0
    %1883 = vmatpush2.msra.mxu0 0.0
    %1884 = vmatprep.subr.mxu0 0.0
    %1885 = vmatpush2.msra.mxu0 0.0
    %1886 = vmatprep.subr.mxu0 0.0
    %1887 = vmatpush2.msra.mxu0 0.0
    %1888 = vmatprep.subr.mxu0 0.0
    %1889 = vmatpush2.msra.mxu0 0.0
    %1890 = vmatprep.subr.mxu0 0.0
    %1891 = vmatpush2.msra.mxu0 0.0
    %1892 = vmatprep.mubr.f32.mxu0 0.0
    %1893 = vmatmul.mubr.f32.gmra.mxu0 %v1686
    %v1894 = vpop.f32.mrf.mxu0
    %v1895 = vadd.f32 %v454, %v1894
    %v1896 = vpop.f32.mrf.mxu0
    %1897 = vdwg.mxu0
    %v1899 = vrot.slane %v1755, 3
    %v1901 = vadd.f32 %v281, %v1899
    %v1902 = vxor.u32 %v1901, 2147483648
    %v1903 = vmul.f32 %v1902, 1.442695
    %v1904 = vpow.pop %v1903
    %v1905 = vadd.f32 %v1904, 1.0
    %v1906 = vrcp.pop %v1905
    %v1907 = vmul.f32 1.0, %v1906
    %v1909 = vrot.slane %v1825, 3
    %v1911 = vadd.f32 %v360, %v1909
    %v1912 = vxor.u32 %v1911, 2147483648
    %v1913 = vmul.f32 %v1912, 1.442695
    %v1914 = vpow.pop %v1913
    %v1915 = vadd.f32 %v1914, 1.0
    %v1916 = vrcp.pop %v1915
    %v1917 = vmul.f32 1.0, %v1916
    %v1919 = vrot.slane %v1895, 3
    %v1921 = vmul.f32 %v1907, %v1919
    %v1922 = vadd.f32 %v439, %v1921
    %v1923 = vtanh.pop %v1922
    %v1924 = vsub.f32 1.0, %v1917
    %v1925 = vmul.f32 %v1924, %v1923
    %v1926 = vrot.slane %v1681, 7
    %v1928 = vmul.f32 %v1917, %v1926
    %v1929 = vadd.f32 %v1925, %v1928
    %vm1930 = vcmask 259077
    %1931 = vst.msk [vmem:[#allocation2] sm:$0x20] %vm1930, %v1929
    %v1933 = vrot.slane %v1929, 5
    %v1934 = vsel %vm456, %v1933, 0
    %1936 = vmatprep.subr.mxu0 0.0
    %1937 = vmatpush1.msra.mxu0 0.0
    %1938 = vmatprep.subr.mxu0 0.0
    %1939 = vmatpush1.msra.mxu0 0.0
    %1940 = vmatprep.subr.mxu0 0.0
    %1941 = vmatpush1.msra.mxu0 0.0
    %1942 = vmatprep.subr.mxu0 0.0
    %1943 = vmatpush1.msra.mxu0 0.0
    %1944 = vmatprep.subr.mxu0 0.0
    %1945 = vmatpush1.msra.mxu0 0.0
    %1946 = vmatprep.subr.mxu0 0.0
    %1947 = vmatpush1.msra.mxu0 0.0
    %1948 = vmatprep.subr.mxu0 0.0
    %1949 = vmatpush1.msra.mxu0 0.0
    %1950 = vmatprep.subr.mxu0 0.0
    %1951 = vmatpush1.msra.mxu0 0.0
    %1952 = vmatprep.subr.mxu0 0.0
    %1953 = vmatpush1.msra.mxu0 0.0
    %1954 = vmatprep.subr.mxu0 0.0
    %1955 = vmatpush1.msra.mxu0 0.0
    %1956 = vmatprep.subr.mxu0 0.0
    %1957 = vmatpush1.msra.mxu0 0.0
    %1958 = vmatprep.subr.mxu0 0.0
    %1959 = vmatpush1.msra.mxu0 0.0
    %1960 = vmatprep.subr.mxu0 0.0
    %1961 = vmatpush1.msra.mxu0 %v445
    %1962 = vmatprep.subr.mxu0 0.0
    %1963 = vmatpush1.msra.mxu0 %v444
    %1964 = vmatprep.subr.mxu0 0.0
    %1965 = vmatpush1.msra.mxu0 %v443
    %1966 = vmatprep.subr.mxu0 0.0
    %1967 = vmatpush1.msra.mxu0 %v442
    %1968 = vmatprep.subr.mxu0 0.0
    %1969 = vmatpush2.msra.mxu0 0.0
    %1970 = vmatprep.subr.mxu0 0.0
    %1971 = vmatpush2.msra.mxu0 0.0
    %1972 = vmatprep.subr.mxu0 0.0
    %1973 = vmatpush2.msra.mxu0 0.0
    %1974 = vmatprep.subr.mxu0 0.0
    %1975 = vmatpush2.msra.mxu0 0.0
    %1976 = vmatprep.subr.mxu0 0.0
    %1977 = vmatpush2.msra.mxu0 0.0
    %1978 = vmatprep.subr.mxu0 0.0
    %1979 = vmatpush2.msra.mxu0 0.0
    %1980 = vmatprep.subr.mxu0 0.0
    %1981 = vmatpush2.msra.mxu0 0.0
    %1982 = vmatprep.subr.mxu0 0.0
    %1983 = vmatpush2.msra.mxu0 0.0
    %1984 = vmatprep.subr.mxu0 0.0
    %1985 = vmatpush2.msra.mxu0 0.0
    %1986 = vmatprep.subr.mxu0 0.0
    %1987 = vmatpush2.msra.mxu0 0.0
    %1988 = vmatprep.subr.mxu0 0.0
    %1989 = vmatpush2.msra.mxu0 0.0
    %1990 = vmatprep.subr.mxu0 0.0
    %1991 = vmatpush2.msra.mxu0 0.0
    %1992 = vmatprep.subr.mxu0 0.0
    %1993 = vmatpush2.msra.mxu0 0.0
    %1994 = vmatprep.subr.mxu0 0.0
    %1995 = vmatpush2.msra.mxu0 0.0
    %1996 = vmatprep.subr.mxu0 0.0
    %1997 = vmatpush2.msra.mxu0 0.0
    %1998 = vmatprep.subr.mxu0 0.0
    %1999 = vmatpush2.msra.mxu0 0.0
    %2000 = vmatprep.mubr.f32.mxu0 0.0
    %2001 = vmatmul.mubr.f32.gmra.mxu0 %v1934
    %v2002 = vpop.f32.mrf.mxu0
    %v2003 = vadd.f32 0.0, %v2002
    %v2004 = vpop.f32.mrf.mxu0
    %2005 = vdwg.mxu0
    %2006 = vmatprep.subr.mxu0 0.0
    %2007 = vmatpush1.msra.mxu0 0.0
    %2008 = vmatprep.subr.mxu0 0.0
    %2009 = vmatpush1.msra.mxu0 0.0
    %2010 = vmatprep.subr.mxu0 0.0
    %2011 = vmatpush1.msra.mxu0 0.0
    %2012 = vmatprep.subr.mxu0 0.0
    %2013 = vmatpush1.msra.mxu0 0.0
    %2014 = vmatprep.subr.mxu0 0.0
    %2015 = vmatpush1.msra.mxu0 0.0
    %2016 = vmatprep.subr.mxu0 0.0
    %2017 = vmatpush1.msra.mxu0 0.0
    %2018 = vmatprep.subr.mxu0 0.0
    %2019 = vmatpush1.msra.mxu0 0.0
    %2020 = vmatprep.subr.mxu0 0.0
    %2021 = vmatpush1.msra.mxu0 0.0
    %2022 = vmatprep.subr.mxu0 0.0
    %2023 = vmatpush1.msra.mxu0 0.0
    %2024 = vmatprep.subr.mxu0 0.0
    %2025 = vmatpush1.msra.mxu0 0.0
    %2026 = vmatprep.subr.mxu0 0.0
    %2027 = vmatpush1.msra.mxu0 0.0
    %2028 = vmatprep.subr.mxu0 0.0
    %2029 = vmatpush1.msra.mxu0 0.0
    %2030 = vmatprep.subr.mxu0 0.0
    %2031 = vmatpush1.msra.mxu0 %v449
    %2032 = vmatprep.subr.mxu0 0.0
    %2033 = vmatpush1.msra.mxu0 %v448
    %2034 = vmatprep.subr.mxu0 0.0
    %2035 = vmatpush1.msra.mxu0 %v447
    %2036 = vmatprep.subr.mxu0 0.0
    %2037 = vmatpush1.msra.mxu0 %v446
    %2038 = vmatprep.subr.mxu0 0.0
    %2039 = vmatpush2.msra.mxu0 0.0
    %2040 = vmatprep.subr.mxu0 0.0
    %2041 = vmatpush2.msra.mxu0 0.0
    %2042 = vmatprep.subr.mxu0 0.0
    %2043 = vmatpush2.msra.mxu0 0.0
    %2044 = vmatprep.subr.mxu0 0.0
    %2045 = vmatpush2.msra.mxu0 0.0
    %2046 = vmatprep.subr.mxu0 0.0
    %2047 = vmatpush2.msra.mxu0 0.0
    %2048 = vmatprep.subr.mxu0 0.0
    %2049 = vmatpush2.msra.mxu0 0.0
    %2050 = vmatprep.subr.mxu0 0.0
    %2051 = vmatpush2.msra.mxu0 0.0
    %2052 = vmatprep.subr.mxu0 0.0
    %2053 = vmatpush2.msra.mxu0 0.0
    %2054 = vmatprep.subr.mxu0 0.0
    %2055 = vmatpush2.msra.mxu0 0.0
    %2056 = vmatprep.subr.mxu0 0.0
    %2057 = vmatpush2.msra.mxu0 0.0
    %2058 = vmatprep.subr.mxu0 0.0
    %2059 = vmatpush2.msra.mxu0 0.0
    %2060 = vmatprep.subr.mxu0 0.0
    %2061 = vmatpush2.msra.mxu0 0.0
    %2062 = vmatprep.subr.mxu0 0.0
    %2063 = vmatpush2.msra.mxu0 0.0
    %2064 = vmatprep.subr.mxu0 0.0
    %2065 = vmatpush2.msra.mxu0 0.0
    %2066 = vmatprep.subr.mxu0 0.0
    %2067 = vmatpush2.msra.mxu0 0.0
    %2068 = vmatprep.subr.mxu0 0.0
    %2069 = vmatpush2.msra.mxu0 0.0
    %2070 = vmatprep.mubr.f32.mxu0 0.0
    %2071 = vmatmul.mubr.f32.gmra.mxu0 %v1934
    %v2072 = vpop.f32.mrf.mxu0
    %v2073 = vadd.f32 0.0, %v2072
    %v2074 = vpop.f32.mrf.mxu0
    %2075 = vdwg.mxu0
    %2076 = vmatprep.subr.mxu0 0.0
    %2077 = vmatpush1.msra.mxu0 0.0
    %2078 = vmatprep.subr.mxu0 0.0
    %2079 = vmatpush1.msra.mxu0 0.0
    %2080 = vmatprep.subr.mxu0 0.0
    %2081 = vmatpush1.msra.mxu0 0.0
    %2082 = vmatprep.subr.mxu0 0.0
    %2083 = vmatpush1.msra.mxu0 0.0
    %2084 = vmatprep.subr.mxu0 0.0
    %2085 = vmatpush1.msra.mxu0 0.0
    %2086 = vmatprep.subr.mxu0 0.0
    %2087 = vmatpush1.msra.mxu0 0.0
    %2088 = vmatprep.subr.mxu0 0.0
    %2089 = vmatpush1.msra.mxu0 0.0
    %2090 = vmatprep.subr.mxu0 0.0
    %2091 = vmatpush1.msra.mxu0 0.0
    %2092 = vmatprep.subr.mxu0 0.0
    %2093 = vmatpush1.msra.mxu0 0.0
    %2094 = vmatprep.subr.mxu0 0.0
    %2095 = vmatpush1.msra.mxu0 0.0
    %2096 = vmatprep.subr.mxu0 0.0
    %2097 = vmatpush1.msra.mxu0 0.0
    %2098 = vmatprep.subr.mxu0 0.0
    %2099 = vmatpush1.msra.mxu0 0.0
    %2100 = vmatprep.subr.mxu0 0.0
    %2101 = vmatpush1.msra.mxu0 %v453
    %2102 = vmatprep.subr.mxu0 0.0
    %2103 = vmatpush1.msra.mxu0 %v452
    %2104 = vmatprep.subr.mxu0 0.0
    %2105 = vmatpush1.msra.mxu0 %v451
    %2106 = vmatprep.subr.mxu0 0.0
    %2107 = vmatpush1.msra.mxu0 %v450
    %2108 = vmatprep.subr.mxu0 0.0
    %2109 = vmatpush2.msra.mxu0 0.0
    %2110 = vmatprep.subr.mxu0 0.0
    %2111 = vmatpush2.msra.mxu0 0.0
    %2112 = vmatprep.subr.mxu0 0.0
    %2113 = vmatpush2.msra.mxu0 0.0
    %2114 = vmatprep.subr.mxu0 0.0
    %2115 = vmatpush2.msra.mxu0 0.0
    %2116 = vmatprep.subr.mxu0 0.0
    %2117 = vmatpush2.msra.mxu0 0.0
    %2118 = vmatprep.subr.mxu0 0.0
    %2119 = vmatpush2.msra.mxu0 0.0
    %2120 = vmatprep.subr.mxu0 0.0
    %2121 = vmatpush2.msra.mxu0 0.0
    %2122 = vmatprep.subr.mxu0 0.0
    %2123 = vmatpush2.msra.mxu0 0.0
    %2124 = vmatprep.subr.mxu0 0.0
    %2125 = vmatpush2.msra.mxu0 0.0
    %2126 = vmatprep.subr.mxu0 0.0
    %2127 = vmatpush2.msra.mxu0 0.0
    %2128 = vmatprep.subr.mxu0 0.0
    %2129 = vmatpush2.msra.mxu0 0.0
    %2130 = vmatprep.subr.mxu0 0.0
    %2131 = vmatpush2.msra.mxu0 0.0
    %2132 = vmatprep.subr.mxu0 0.0
    %2133 = vmatpush2.msra.mxu0 0.0
    %2134 = vmatprep.subr.mxu0 0.0
    %2135 = vmatpush2.msra.mxu0 0.0
    %2136 = vmatprep.subr.mxu0 0.0
    %2137 = vmatpush2.msra.mxu0 0.0
    %2138 = vmatprep.subr.mxu0 0.0
    %2139 = vmatpush2.msra.mxu0 0.0
    %2140 = vmatprep.mubr.f32.mxu0 0.0
    %2141 = vmatmul.mubr.f32.gmra.mxu0 %v1934
    %v2142 = vpop.f32.mrf.mxu0
    %v2143 = vadd.f32 %v454, %v2142
    %v2144 = vpop.f32.mrf.mxu0
    %2145 = vdwg.mxu0
    %v2147 = vrot.slane %v2003, 2
    %v2149 = vadd.f32 %v281, %v2147
    %v2150 = vxor.u32 %v2149, 2147483648
    %v2151 = vmul.f32 %v2150, 1.442695
    %v2152 = vpow.pop %v2151
    %v2153 = vadd.f32 %v2152, 1.0
    %v2154 = vrcp.pop %v2153
    %v2155 = vmul.f32 1.0, %v2154
    %v2157 = vrot.slane %v2073, 2
    %v2159 = vadd.f32 %v360, %v2157
    %v2160 = vxor.u32 %v2159, 2147483648
    %v2161 = vmul.f32 %v2160, 1.442695
    %v2162 = vpow.pop %v2161
    %v2163 = vadd.f32 %v2162, 1.0
    %v2164 = vrcp.pop %v2163
    %v2165 = vmul.f32 1.0, %v2164
    %v2167 = vrot.slane %v2143, 2
    %v2169 = vmul.f32 %v2155, %v2167
    %v2170 = vadd.f32 %v439, %v2169
    %v2171 = vtanh.pop %v2170
    %v2172 = vsub.f32 1.0, %v2165
    %v2173 = vmul.f32 %v2172, %v2171
    %v2174 = vrot.slane %v1929, 7
    %v2176 = vmul.f32 %v2165, %v2174
    %v2177 = vadd.f32 %v2173, %v2176
    %vm2178 = vcmask 260102
    %2179 = vst.msk [vmem:[#allocation2] sm:$0x40] %vm2178, %v2177
    %v2181 = vrot.slane %v2177, 6
    %v2182 = vsel %vm456, %v2181, 0
    %2184 = vmatprep.subr.mxu0 0.0
    %2185 = vmatpush1.msra.mxu0 0.0
    %2186 = vmatprep.subr.mxu0 0.0
    %2187 = vmatpush1.msra.mxu0 0.0
    %2188 = vmatprep.subr.mxu0 0.0
    %2189 = vmatpush1.msra.mxu0 0.0
    %2190 = vmatprep.subr.mxu0 0.0
    %2191 = vmatpush1.msra.mxu0 0.0
    %2192 = vmatprep.subr.mxu0 0.0
    %2193 = vmatpush1.msra.mxu0 0.0
    %2194 = vmatprep.subr.mxu0 0.0
    %2195 = vmatpush1.msra.mxu0 0.0
    %2196 = vmatprep.subr.mxu0 0.0
    %2197 = vmatpush1.msra.mxu0 0.0
    %2198 = vmatprep.subr.mxu0 0.0
    %2199 = vmatpush1.msra.mxu0 0.0
    %2200 = vmatprep.subr.mxu0 0.0
    %2201 = vmatpush1.msra.mxu0 0.0
    %2202 = vmatprep.subr.mxu0 0.0
    %2203 = vmatpush1.msra.mxu0 0.0
    %2204 = vmatprep.subr.mxu0 0.0
    %2205 = vmatpush1.msra.mxu0 0.0
    %2206 = vmatprep.subr.mxu0 0.0
    %2207 = vmatpush1.msra.mxu0 0.0
    %2208 = vmatprep.subr.mxu0 0.0
    %2209 = vmatpush1.msra.mxu0 %v445
    %2210 = vmatprep.subr.mxu0 0.0
    %2211 = vmatpush1.msra.mxu0 %v444
    %2212 = vmatprep.subr.mxu0 0.0
    %2213 = vmatpush1.msra.mxu0 %v443
    %2214 = vmatprep.subr.mxu0 0.0
    %2215 = vmatpush1.msra.mxu0 %v442
    %2216 = vmatprep.subr.mxu0 0.0
    %2217 = vmatpush2.msra.mxu0 0.0
    %2218 = vmatprep.subr.mxu0 0.0
    %2219 = vmatpush2.msra.mxu0 0.0
    %2220 = vmatprep.subr.mxu0 0.0
    %2221 = vmatpush2.msra.mxu0 0.0
    %2222 = vmatprep.subr.mxu0 0.0
    %2223 = vmatpush2.msra.mxu0 0.0
    %2224 = vmatprep.subr.mxu0 0.0
    %2225 = vmatpush2.msra.mxu0 0.0
    %2226 = vmatprep.subr.mxu0 0.0
    %2227 = vmatpush2.msra.mxu0 0.0
    %2228 = vmatprep.subr.mxu0 0.0
    %2229 = vmatpush2.msra.mxu0 0.0
    %2230 = vmatprep.subr.mxu0 0.0
    %2231 = vmatpush2.msra.mxu0 0.0
    %2232 = vmatprep.subr.mxu0 0.0
    %2233 = vmatpush2.msra.mxu0 0.0
    %2234 = vmatprep.subr.mxu0 0.0
    %2235 = vmatpush2.msra.mxu0 0.0
    %2236 = vmatprep.subr.mxu0 0.0
    %2237 = vmatpush2.msra.mxu0 0.0
    %2238 = vmatprep.subr.mxu0 0.0
    %2239 = vmatpush2.msra.mxu0 0.0
    %2240 = vmatprep.subr.mxu0 0.0
    %2241 = vmatpush2.msra.mxu0 0.0
    %2242 = vmatprep.subr.mxu0 0.0
    %2243 = vmatpush2.msra.mxu0 0.0
    %2244 = vmatprep.subr.mxu0 0.0
    %2245 = vmatpush2.msra.mxu0 0.0
    %2246 = vmatprep.subr.mxu0 0.0
    %2247 = vmatpush2.msra.mxu0 0.0
    %2248 = vmatprep.mubr.f32.mxu0 0.0
    %2249 = vmatmul.mubr.f32.gmra.mxu0 %v2182
    %v2250 = vpop.f32.mrf.mxu0
    %v2251 = vadd.f32 0.0, %v2250
    %v2252 = vpop.f32.mrf.mxu0
    %2253 = vdwg.mxu0
    %2254 = vmatprep.subr.mxu0 0.0
    %2255 = vmatpush1.msra.mxu0 0.0
    %2256 = vmatprep.subr.mxu0 0.0
    %2257 = vmatpush1.msra.mxu0 0.0
    %2258 = vmatprep.subr.mxu0 0.0
    %2259 = vmatpush1.msra.mxu0 0.0
    %2260 = vmatprep.subr.mxu0 0.0
    %2261 = vmatpush1.msra.mxu0 0.0
    %2262 = vmatprep.subr.mxu0 0.0
    %2263 = vmatpush1.msra.mxu0 0.0
    %2264 = vmatprep.subr.mxu0 0.0
    %2265 = vmatpush1.msra.mxu0 0.0
    %2266 = vmatprep.subr.mxu0 0.0
    %2267 = vmatpush1.msra.mxu0 0.0
    %2268 = vmatprep.subr.mxu0 0.0
    %2269 = vmatpush1.msra.mxu0 0.0
    %2270 = vmatprep.subr.mxu0 0.0
    %2271 = vmatpush1.msra.mxu0 0.0
    %2272 = vmatprep.subr.mxu0 0.0
    %2273 = vmatpush1.msra.mxu0 0.0
    %2274 = vmatprep.subr.mxu0 0.0
    %2275 = vmatpush1.msra.mxu0 0.0
    %2276 = vmatprep.subr.mxu0 0.0
    %2277 = vmatpush1.msra.mxu0 0.0
    %2278 = vmatprep.subr.mxu0 0.0
    %2279 = vmatpush1.msra.mxu0 %v449
    %2280 = vmatprep.subr.mxu0 0.0
    %2281 = vmatpush1.msra.mxu0 %v448
    %2282 = vmatprep.subr.mxu0 0.0
    %2283 = vmatpush1.msra.mxu0 %v447
    %2284 = vmatprep.subr.mxu0 0.0
    %2285 = vmatpush1.msra.mxu0 %v446
    %2286 = vmatprep.subr.mxu0 0.0
    %2287 = vmatpush2.msra.mxu0 0.0
    %2288 = vmatprep.subr.mxu0 0.0
    %2289 = vmatpush2.msra.mxu0 0.0
    %2290 = vmatprep.subr.mxu0 0.0
    %2291 = vmatpush2.msra.mxu0 0.0
    %2292 = vmatprep.subr.mxu0 0.0
    %2293 = vmatpush2.msra.mxu0 0.0
    %2294 = vmatprep.subr.mxu0 0.0
    %2295 = vmatpush2.msra.mxu0 0.0
    %2296 = vmatprep.subr.mxu0 0.0
    %2297 = vmatpush2.msra.mxu0 0.0
    %2298 = vmatprep.subr.mxu0 0.0
    %2299 = vmatpush2.msra.mxu0 0.0
    %2300 = vmatprep.subr.mxu0 0.0
    %2301 = vmatpush2.msra.mxu0 0.0
    %2302 = vmatprep.subr.mxu0 0.0
    %2303 = vmatpush2.msra.mxu0 0.0
    %2304 = vmatprep.subr.mxu0 0.0
    %2305 = vmatpush2.msra.mxu0 0.0
    %2306 = vmatprep.subr.mxu0 0.0
    %2307 = vmatpush2.msra.mxu0 0.0
    %2308 = vmatprep.subr.mxu0 0.0
    %2309 = vmatpush2.msra.mxu0 0.0
    %2310 = vmatprep.subr.mxu0 0.0
    %2311 = vmatpush2.msra.mxu0 0.0
    %2312 = vmatprep.subr.mxu0 0.0
    %2313 = vmatpush2.msra.mxu0 0.0
    %2314 = vmatprep.subr.mxu0 0.0
    %2315 = vmatpush2.msra.mxu0 0.0
    %2316 = vmatprep.subr.mxu0 0.0
    %2317 = vmatpush2.msra.mxu0 0.0
    %2318 = vmatprep.mubr.f32.mxu0 0.0
    %2319 = vmatmul.mubr.f32.gmra.mxu0 %v2182
    %v2320 = vpop.f32.mrf.mxu0
    %v2321 = vadd.f32 0.0, %v2320
    %v2322 = vpop.f32.mrf.mxu0
    %2323 = vdwg.mxu0
    %2324 = vmatprep.subr.mxu0 0.0
    %2325 = vmatpush1.msra.mxu0 0.0
    %2326 = vmatprep.subr.mxu0 0.0
    %2327 = vmatpush1.msra.mxu0 0.0
    %2328 = vmatprep.subr.mxu0 0.0
    %2329 = vmatpush1.msra.mxu0 0.0
    %2330 = vmatprep.subr.mxu0 0.0
    %2331 = vmatpush1.msra.mxu0 0.0
    %2332 = vmatprep.subr.mxu0 0.0
    %2333 = vmatpush1.msra.mxu0 0.0
    %2334 = vmatprep.subr.mxu0 0.0
    %2335 = vmatpush1.msra.mxu0 0.0
    %2336 = vmatprep.subr.mxu0 0.0
    %2337 = vmatpush1.msra.mxu0 0.0
    %2338 = vmatprep.subr.mxu0 0.0
    %2339 = vmatpush1.msra.mxu0 0.0
    %2340 = vmatprep.subr.mxu0 0.0
    %2341 = vmatpush1.msra.mxu0 0.0
    %2342 = vmatprep.subr.mxu0 0.0
    %2343 = vmatpush1.msra.mxu0 0.0
    %2344 = vmatprep.subr.mxu0 0.0
    %2345 = vmatpush1.msra.mxu0 0.0
    %2346 = vmatprep.subr.mxu0 0.0
    %2347 = vmatpush1.msra.mxu0 0.0
    %2348 = vmatprep.subr.mxu0 0.0
    %2349 = vmatpush1.msra.mxu0 %v453
    %2350 = vmatprep.subr.mxu0 0.0
    %2351 = vmatpush1.msra.mxu0 %v452
    %2352 = vmatprep.subr.mxu0 0.0
    %2353 = vmatpush1.msra.mxu0 %v451
    %2354 = vmatprep.subr.mxu0 0.0
    %2355 = vmatpush1.msra.mxu0 %v450
    %2356 = vmatprep.subr.mxu0 0.0
    %2357 = vmatpush2.msra.mxu0 0.0
    %2358 = vmatprep.subr.mxu0 0.0
    %2359 = vmatpush2.msra.mxu0 0.0
    %2360 = vmatprep.subr.mxu0 0.0
    %2361 = vmatpush2.msra.mxu0 0.0
    %2362 = vmatprep.subr.mxu0 0.0
    %2363 = vmatpush2.msra.mxu0 0.0
    %2364 = vmatprep.subr.mxu0 0.0
    %2365 = vmatpush2.msra.mxu0 0.0
    %2366 = vmatprep.subr.mxu0 0.0
    %2367 = vmatpush2.msra.mxu0 0.0
    %2368 = vmatprep.subr.mxu0 0.0
    %2369 = vmatpush2.msra.mxu0 0.0
    %2370 = vmatprep.subr.mxu0 0.0
    %2371 = vmatpush2.msra.mxu0 0.0
    %2372 = vmatprep.subr.mxu0 0.0
    %2373 = vmatpush2.msra.mxu0 0.0
    %2374 = vmatprep.subr.mxu0 0.0
    %2375 = vmatpush2.msra.mxu0 0.0
    %2376 = vmatprep.subr.mxu0 0.0
    %2377 = vmatpush2.msra.mxu0 0.0
    %2378 = vmatprep.subr.mxu0 0.0
    %2379 = vmatpush2.msra.mxu0 0.0
    %2380 = vmatprep.subr.mxu0 0.0
    %2381 = vmatpush2.msra.mxu0 0.0
    %2382 = vmatprep.subr.mxu0 0.0
    %2383 = vmatpush2.msra.mxu0 0.0
    %2384 = vmatprep.subr.mxu0 0.0
    %2385 = vmatpush2.msra.mxu0 0.0
    %2386 = vmatprep.subr.mxu0 0.0
    %2387 = vmatpush2.msra.mxu0 0.0
    %2388 = vmatprep.mubr.f32.mxu0 0.0
    %2389 = vmatmul.mubr.f32.gmra.mxu0 %v2182
    %v2390 = vpop.f32.mrf.mxu0
    %v2391 = vadd.f32 %v454, %v2390
    %v2392 = vpop.f32.mrf.mxu0
    %2393 = vdwg.mxu0
    %v2395 = vrot.slane %v2251, 1
    %v2397 = vadd.f32 %v281, %v2395
    %v2398 = vxor.u32 %v2397, 2147483648
    %v2399 = vmul.f32 %v2398, 1.442695
    %v2400 = vpow.pop %v2399
    %v2401 = vadd.f32 %v2400, 1.0
    %v2402 = vrcp.pop %v2401
    %v2403 = vmul.f32 1.0, %v2402
    %v2405 = vrot.slane %v2321, 1
    %v2407 = vadd.f32 %v360, %v2405
    %v2408 = vxor.u32 %v2407, 2147483648
    %v2409 = vmul.f32 %v2408, 1.442695
    %v2410 = vpow.pop %v2409
    %v2411 = vadd.f32 %v2410, 1.0
    %v2412 = vrcp.pop %v2411
    %v2413 = vmul.f32 1.0, %v2412
    %v2415 = vrot.slane %v2391, 1
    %v2417 = vmul.f32 %v2403, %v2415
    %v2418 = vadd.f32 %v439, %v2417
    %v2419 = vtanh.pop %v2418
    %v2420 = vsub.f32 1.0, %v2413
    %v2421 = vmul.f32 %v2420, %v2419
    %v2422 = vrot.slane %v2177, 7
    %v2424 = vmul.f32 %v2413, %v2422
    %v2425 = vadd.f32 %v2421, %v2424
    %vm2426 = vcmask 261127
    %2427 = vst.msk [vmem:[#allocation2] sm:$0x80] %vm2426, %v2425
    %2428 = vst.msk [vmem:[#allocation23 - $0x7] sm:$0x80] %vm2426, %v2425
    %v2429 = vld [vmem:[#allocation2] sm:$0xff]
    %v2430 = vld [vmem:[%s13] sm:$0xff]
    %v2431 = vld [vmem:[%s13 + $0x8] sm:$0xff]
    %v2432 = vld [vmem:[%s13 + $0x10] sm:$0xff]
    %v2433 = vld [vmem:[%s13 + $0x18] sm:$0xff]
    %v2434 = vld [vmem:[#allocation21] sm:$0x1]
    %v2436 = vlaneseq
    %v2437 = vshrl.u32 %v2436, 7
    %v2438 = vsub.s32 0, %v2437
    %v2439 = vrot.slane %v2434, %v2438
    %v2442 = vsel %vm456, %v2429, 0
    %2444 = vmatprep.subr.mxu0 0.0
    %2445 = vmatpush1.msra.mxu0 0.0
    %2446 = vmatprep.subr.mxu0 0.0
    %2447 = vmatpush1.msra.mxu0 0.0
    %2448 = vmatprep.subr.mxu0 0.0
    %2449 = vmatpush1.msra.mxu0 0.0
    %2450 = vmatprep.subr.mxu0 0.0
    %2451 = vmatpush1.msra.mxu0 0.0
    %2452 = vmatprep.subr.mxu0 0.0
    %2453 = vmatpush1.msra.mxu0 0.0
    %2454 = vmatprep.subr.mxu0 0.0
    %2455 = vmatpush1.msra.mxu0 0.0
    %2456 = vmatprep.subr.mxu0 0.0
    %2457 = vmatpush1.msra.mxu0 0.0
    %2458 = vmatprep.subr.mxu0 0.0
    %2459 = vmatpush1.msra.mxu0 0.0
    %2460 = vmatprep.subr.mxu0 0.0
    %2461 = vmatpush1.msra.mxu0 0.0
    %2462 = vmatprep.subr.mxu0 0.0
    %2463 = vmatpush1.msra.mxu0 0.0
    %2464 = vmatprep.subr.mxu0 0.0
    %2465 = vmatpush1.msra.mxu0 0.0
    %2466 = vmatprep.subr.mxu0 0.0
    %2467 = vmatpush1.msra.mxu0 0.0
    %2468 = vmatprep.subr.mxu0 0.0
    %2469 = vmatpush1.msra.mxu0 %v2433
    %2470 = vmatprep.subr.mxu0 0.0
    %2471 = vmatpush1.msra.mxu0 %v2432
    %2472 = vmatprep.subr.mxu0 0.0
    %2473 = vmatpush1.msra.mxu0 %v2431
    %2474 = vmatprep.subr.mxu0 0.0
    %2475 = vmatpush1.msra.mxu0 %v2430
    %2476 = vmatprep.subr.mxu0 0.0
    %2477 = vmatpush2.msra.mxu0 0.0
    %2478 = vmatprep.subr.mxu0 0.0
    %2479 = vmatpush2.msra.mxu0 0.0
    %2480 = vmatprep.subr.mxu0 0.0
    %2481 = vmatpush2.msra.mxu0 0.0
    %2482 = vmatprep.subr.mxu0 0.0
    %2483 = vmatpush2.msra.mxu0 0.0
    %2484 = vmatprep.subr.mxu0 0.0
    %2485 = vmatpush2.msra.mxu0 0.0
    %2486 = vmatprep.subr.mxu0 0.0
    %2487 = vmatpush2.msra.mxu0 0.0
    %2488 = vmatprep.subr.mxu0 0.0
    %2489 = vmatpush2.msra.mxu0 0.0
    %2490 = vmatprep.subr.mxu0 0.0
    %2491 = vmatpush2.msra.mxu0 0.0
    %2492 = vmatprep.subr.mxu0 0.0
    %2493 = vmatpush2.msra.mxu0 0.0
    %2494 = vmatprep.subr.mxu0 0.0
    %2495 = vmatpush2.msra.mxu0 0.0
    %2496 = vmatprep.subr.mxu0 0.0
    %2497 = vmatpush2.msra.mxu0 0.0
    %2498 = vmatprep.subr.mxu0 0.0
    %2499 = vmatpush2.msra.mxu0 0.0
    %2500 = vmatprep.subr.mxu0 0.0
    %2501 = vmatpush2.msra.mxu0 0.0
    %2502 = vmatprep.subr.mxu0 0.0
    %2503 = vmatpush2.msra.mxu0 0.0
    %2504 = vmatprep.subr.mxu0 0.0
    %2505 = vmatpush2.msra.mxu0 0.0
    %2506 = vmatprep.subr.mxu0 0.0
    %2507 = vmatpush2.msra.mxu0 0.0
    %2508 = vmatprep.mubr.f32.mxu0 0.0
    %2509 = vmatmul.mubr.f32.gmra.mxu0 %v2442
    %v2510 = vpop.f32.mrf.mxu0
    %v2511 = vadd.f32 %v2439, %v2510
    %v2512 = vpop.f32.mrf.mxu0
    %2513 = vdwg.mxu0
    %v2514 = vld [vmem:[#allocation8] sm:$0xff]
    %vm2515 = vcmp.ge.f32.partialorder %v2514, 0.3
    %v2516 = vmul.f32 %v2511, 1.4285715
    %v2517 = vsel %vm2515, %v2516, 0.0
    %v2518 = vsel %vm210, %v2517, -inf
    %2519 = vmax.xlane.f32.xlu0 %v2518
    %v2520 = vpop.xlane.xlu0 %2519
    %v2521 = vsub.f32 %v2517, %v2520
    %v2522 = vmul.f32 %v2521, 1.442695
    %v2523 = vpow.pop %v2522
    %v2524 = vsel %vm210, %v2523, 0.0
    %2525 = vadd.xlane.f32.xlu0 %v2524
    %v2526 = vpop.xlane.xlu0 %2525
    %v2527 = vrcp.pop %v2526
    %v2528 = vmul.f32 1.0, %v2527
    %v2529 = vmul.f32 %v2523, %v2528
    %2530 = vst.msk [vmem:[%s15] sm:$0xff] %vm210, %v2529
    // Predicated region
    $region110: #{charrnn_forward.1} parent=1 // pred_check
      _
    $region111: #{charrnn_forward.1} parent=1 // pred_check_branch
      %2532 = sbr.rel (0) target = $region113
    $region112: #{charrnn_forward.1} parent=1 // pred_region
      _
    $region113: #{charrnn_forward.1} parent=1 // pred_fallthru
      _
    // Predicated region
    $region114: #{charrnn_forward.1} parent=1 // pred_check
      _
    $region115: #{charrnn_forward.1} parent=1 // pred_check_branch
      %2534 = sbr.rel (0) target = $region117
    $region116: #{charrnn_forward.1} parent=1 // pred_region
      %s2536 = ssub.s32 16, 16
      %2537 = vsyncadd [#allocation5], %s2536
      %s2539 = sshll.u32 [#allocation23], 4
      %s2540 = int_to_ptr.vmem [resolvable:$true] %s2539
      %2542 = dma.vmem_to_hbm [thread:$0]  %s2540, 16, %s16, [#allocation5]
    $region117: #{charrnn_forward.1} parent=1 // pred_fallthru
      _
    // Predicated region
    $region118: #{charrnn_forward.1} parent=1 // pred_check
      _
    $region119: #{charrnn_forward.1} parent=1 // pred_check_branch
      %2544 = sbr.rel (0) target = $region121
    $region120: #{charrnn_forward.1} parent=1 // pred_region
      _
    $region121: #{charrnn_forward.1} parent=1 // pred_fallthru
      _
    // Predicated region
    $region122: #{charrnn_forward.1} parent=1 // pred_check
      _
    $region123: #{charrnn_forward.1} parent=1 // pred_check_branch
      %2546 = sbr.rel (0) target = $region125
    $region124: #{charrnn_forward.1} parent=1 // pred_region
      %2547 = dma.done [#allocation5], 16
    $region125: #{charrnn_forward.1} parent=1 // pred_fallthru
      _
    %2548 = vsyncpa [#allocation4], 1
    %2549 = vsyncpa [#allocation7], 1
    %2550 = vsyncpa [#allocation10], 1
    %2551 = vsyncpa [#allocation13], 1
    %2552 = vsyncpa [#allocation16], 1
    %2553 = vsyncpa [#allocation19], 1
    %2554 = vsyncpa [#allocation22], 1
    %2555 = vsyncpa [#allocation5], 1

</llo_original>
